<compile_context>
chip_gen: v5e
topology: v5e:2x2
jax: 0.10.0
libtpu: 0.0.40
codegen_flags: <defaults>
</compile_context>

<pallas_src>
import functools

import numpy as np
import jax
import jax.numpy as jnp
from jax import lax
from jax.experimental import pallas as pl
from jax.experimental.pallas import tpu as pltpu


# ----------------------------------------------------------------------------
# Relative-position bias (Attention.compute_bias) -- index math + embedding
# gather, done once outside the kernel.
# ----------------------------------------------------------------------------
def compute_bias(shape_2d, num_buckets, emb_weight):
    Hg, Wg = shape_2d
    nbh = num_buckets // 2
    rel_v = np.arange(Hg)[None, :] - np.arange(Hg)[:, None]          # (Hg, Hg)
    rel_h = np.arange(Wg)[None, :] - np.arange(Wg)[:, None]          # (Wg, Wg)
    rel_v = np.tile(rel_v, (Wg, Wg)).reshape(Wg, Hg, Wg, Hg)
    rel_v = rel_v.transpose(1, 0, 3, 2).reshape(Hg * Wg, -1)         # (S, S)
    rel_h = np.tile(rel_h, (Hg, Hg)).reshape(Hg * Wg, -1)            # (S, S)
    hamming = np.abs(rel_h) + np.abs(rel_v)
    is_small = hamming <= nbh
    buckets = (rel_v + nbh) * num_buckets + (rel_h + nbh)
    buckets = np.where(is_small, buckets, 0)
    return jnp.asarray(emb_weight)[jnp.asarray(buckets)]             # (S, S, dh)


def prepare_position_bias(position_bias):
    """One-time, batch-invariant layout prep: (S, S, dh) -> (dh, S, S) f32."""
    return jnp.transpose(position_bias, (2, 0, 1)).astype(jnp.float32)


# ----------------------------------------------------------------------------
# Pallas kernel: full Block forward for ONE batch element per grid step.
#   pre-LN -> fused-QKV attention (+ contextual relative-position term)
#   -> softmax -> output proj -> residual -> pre-LN FeedForward -> residual
# ----------------------------------------------------------------------------
def block_kernel(x_ref, ln1_g_ref, ln1_b_ref, wqkv_ref, wo_ref, pb_ref,
                 ln2_g_ref, ln2_b_ref, w1_ref, b1_ref, w2_ref, b2_ref, o_ref,
                 *, seq, n_heads, dim_head, scale, eps):
    inner = n_heads * dim_head
    bf16 = jnp.bfloat16
    f32 = jnp.float32

    x = x_ref[...]                                                   # (S, D) f32

    # ---- LayerNorm (AttentionBlock.layer_norm), f32 ----
    mu = jnp.mean(x, axis=-1, keepdims=True)
    var = jnp.mean(jnp.square(x - mu), axis=-1, keepdims=True)
    xn = (x - mu) * lax.rsqrt(var + eps) * ln1_g_ref[...] + ln1_b_ref[...]

    # ---- fused QKV projection, feature-major output (3*inner, S) ----
    # One standard-orientation MXU matmul; the q/k/v split below is a sublane slice
    # at multiples of 8 and heads land directly in (H, dh, S) with no head transposes.
    xn_t = xn.T                                                      # (D, S) f32, tiny
    qkv_t = jnp.dot(wqkv_ref[...], xn_t.astype(bf16),
                    preferred_element_type=f32)                      # (3*inner, S)
    q_t = qkv_t[0:inner].reshape(n_heads, dim_head, seq)             # (H, dh, S)
    k_t = qkv_t[inner:2 * inner].reshape(n_heads, dim_head, seq)
    v_t = qkv_t[2 * inner:3 * inner].reshape(n_heads, dim_head, seq)

    # ---- attention scores + contextual relative-position term (VPU, dh=8) ----
    # qk[h,i,j] = sum_d q[h,d,i] * k[h,d,j]
    # cp[h,i,j] = sum_d q[h,d,i] * pb[d,i,j]   (pb already (dh,S,S), done in wrapper)
    qk = jnp.sum(q_t[:, :, :, None] * k_t[:, :, None, :], axis=1)    # (H, S, S)
    cp = jnp.sum(q_t[:, :, :, None] * pb_ref[...][None, :, :, :], axis=1)
    scores = (qk + cp) * scale                                       # matches reference order
    # TODO(synk): attention_mask / top-k pruning branches (defaults None / -1) not implemented.

    # ---- softmax (f32; exp and reciprocal on EUP) ----
    m = jnp.max(scores, axis=-1, keepdims=True)
    e = jnp.exp(scores - m)
    attn = e * pl.reciprocal(jnp.sum(e, axis=-1, keepdims=True), approx=True)

    # ---- attn @ v (VPU), fold heads (free leading-dim merge), output proj ----
    ctx_t = jnp.sum(attn[:, None, :, :] * v_t[:, :, None, :], axis=3)  # (H, dh, S)
    ctx = ctx_t.reshape(inner, seq).T                                   # (S, inner), tiny transpose
    attn_out = jnp.dot(ctx.astype(bf16), wo_ref[...],
                       preferred_element_type=f32)                      # (S, D)
    h1 = x + attn_out                                                   # residual (dropout p=0)

    # ---- PreNorm FeedForward ----
    mu2 = jnp.mean(h1, axis=-1, keepdims=True)
    var2 = jnp.mean(jnp.square(h1 - mu2), axis=-1, keepdims=True)
    h1n = (h1 - mu2) * lax.rsqrt(var2 + eps) * ln2_g_ref[...] + ln2_b_ref[...]
    y = jnp.dot(h1n.astype(bf16), w1_ref[...],
                preferred_element_type=f32) + b1_ref[...]               # (S, hidden) lane-dense
    y = jnp.where(y >= 0, y, 0.2 * y)                                   # LeakyReLU(0.2)
    ff = jnp.dot(y.astype(bf16), w2_ref[...],
                 preferred_element_type=f32) + b2_ref[...]              # (S, D)

    o_ref[...] = (h1 + ff).astype(o_ref.dtype)


def block_forward(hidden_states, params, pb_kernel, *, n_heads, dim_head,
                  scale, eps=1e-5):
    """Block.forward for mask=None, topk=-1. pb_kernel is the precomputed (dh,S,S) bias."""
    B, S, D = hidden_states.shape
    x2 = hidden_states.reshape(B * S, D)

    ins = [
        x2,
        params["ln1_g"], params["ln1_b"],
        params["wqkv_t"], params["wo"], pb_kernel,
        params["ln2_g"], params["ln2_b"],
        params["w1"], params["b1"], params["w2"], params["b2"],
    ]

    def resident_spec(a):
        # Constant index_map: fetched once, stays VMEM-resident across grid steps.
        return pl.BlockSpec(a.shape, lambda b, _z=(0,) * a.ndim: _z)

    in_specs = ([pl.BlockSpec((S, D), lambda b: (b, 0))]
                + [resident_spec(a) for a in ins[1:]])

    kernel = functools.partial(block_kernel, seq=S, n_heads=n_heads,
                               dim_head=dim_head, scale=scale, eps=eps)

    out2 = pl.pallas_call(
        kernel,
        out_shape=jax.ShapeDtypeStruct((B * S, D), hidden_states.dtype),
        grid_spec=pltpu.PrefetchScalarGridSpec(
            num_scalar_prefetch=0,
            grid=(B,),                               # one batch element per step
            in_specs=in_specs,
            out_specs=pl.BlockSpec((S, D), lambda b: (b, 0)),
        ),
        compiler_params=pltpu.CompilerParams(
            dimension_semantics=("parallel",),       # megacore-shardable on v7x
            vmem_limit_bytes=32 * 1024 * 1024,       # re-derive from S^2 buffers at scale
        ),
    )(*ins)
    return out2.reshape(B, S, D)


# ----------------------------------------------------------------------------
# Deterministic parameter construction mirroring Block.__init__ shapes.
# Weights are stored once in the kernel-ready layout/dtype (bf16 MXU operands).
# ----------------------------------------------------------------------------
def init_params(key, dim, n_heads, dim_head, num_buckets, mlp_ratio):
    inner = n_heads * dim_head
    hidden = dim * mlp_ratio
    ks = jax.random.split(key, 8)
    f32 = jnp.float32
    bf16 = jnp.bfloat16

    # nn.Linear(dim, inner*3, bias=False): weight (3*inner, dim).  The reference
    # reshapes the qkv output to (..., inner, 3): q/k/v read interleaved output
    # columns 0::3 / 1::3 / 2::3 == weight rows 0::3 / 1::3 / 2::3.  Repack once so
    # the kernel's fused feature-major matmul yields contiguous q|k|v row blocks.
    w_qkv = 0.05 * jax.random.normal(ks[0], (3 * inner, dim), f32)
    wqkv_t = jnp.concatenate([w_qkv[0::3], w_qkv[1::3], w_qkv[2::3]], axis=0)  # (3*inner, dim)
    # nn.Linear(inner, dim, bias=False): weight (dim, inner) -> (inner, dim)
    wo = (0.05 * jax.random.normal(ks[1], (dim, inner), f32)).T
    # nn.Embedding(num_buckets**2, dim_head)
    emb = 0.05 * jax.random.normal(ks[2], (num_buckets ** 2, dim_head), f32)
    # AttentionBlock LayerNorm / PreNorm LayerNorm
    ln1_g = (1.0 + 0.05 * jax.random.normal(ks[3], (dim,), f32)).reshape(1, dim)
    ln1_b = (0.05 * jax.random.normal(ks[4], (dim,), f32)).reshape(1, dim)
    ln2_g = (1.0 + 0.05 * jax.random.normal(ks[5], (dim,), f32)).reshape(1, dim)
    ln2_b = (0.05 * jax.random.normal(ks[6], (dim,), f32)).reshape(1, dim)
    # FeedForward linears
    ks2 = jax.random.split(ks[7], 4)
    w1 = (0.05 * jax.random.normal(ks2[0], (hidden, dim), f32)).T    # (dim, hidden)
    b1 = (0.05 * jax.random.normal(ks2[1], (hidden,), f32)).reshape(1, hidden)
    w2 = (0.05 * jax.random.normal(ks2[2], (dim, hidden), f32)).T    # (hidden, dim)
    b2 = (0.05 * jax.random.normal(ks2[3], (dim,), f32)).reshape(1, dim)

    params = dict(
        ln1_g=ln1_g, ln1_b=ln1_b,
        wqkv_t=wqkv_t.astype(bf16), wo=wo.astype(bf16),
        ln2_g=ln2_g, ln2_b=ln2_b,
        w1=w1.astype(bf16), b1=b1, w2=w2.astype(bf16), b2=b2,
    )
    return params, emb


if __name__ == "__main__":
    # Config (matches the Attention/Block constructor fields):
    #   dim=32, num_heads=4, dim_head=8, relative_attention_num_buckets=9 (odd),
    #   dropout_rate=0.0, scale=True, mlp_ratio=4, is_decoder=False.
    B = 2
    shape_2d = (4, 4)
    S = shape_2d[0] * shape_2d[1]
    dim, n_heads, dim_head = 32, 4, 8
    num_buckets, mlp_ratio = 9, 4
    scale = dim ** (-0.5)

    key = jax.random.PRNGKey(0)
    kx, kp = jax.random.split(key)
    x = jax.random.normal(kx, (B, S, dim), jnp.float32)

    params, emb_weight = init_params(kp, dim, n_heads, dim_head, num_buckets, mlp_ratio)
    position_bias = compute_bias(shape_2d, num_buckets, emb_weight)   # (S, S, dim_head)
    pb_kernel = prepare_position_bias(position_bias)                  # hoisted once: (dh, S, S)

    out = block_forward(x, params, pb_kernel,
                        n_heads=n_heads, dim_head=dim_head, scale=scale)
    jax.block_until_ready(out)
    # Module forward returns (hidden_states, position_bias); bias is returned unchanged.
    assert out.shape == (B, S, dim) and position_bias.shape == (S, S, dim_head)
    print("KERNEL_OK")
</pallas_src>

<mosaic_0001>
module attributes {stable_mosaic.version = 11 : i64} {
  func.func @block_kernel(%arg0: i32, %arg1: memref<16x32xf32, #tpu.memory_space<vmem>>, %arg2: memref<1x32xf32, #tpu.memory_space<vmem>>, %arg3: memref<1x32xf32, #tpu.memory_space<vmem>>, %arg4: memref<96x32xbf16, #tpu.memory_space<vmem>>, %arg5: memref<32x32xbf16, #tpu.memory_space<vmem>>, %arg6: memref<8x16x16xf32, #tpu.memory_space<vmem>>, %arg7: memref<1x32xf32, #tpu.memory_space<vmem>>, %arg8: memref<1x32xf32, #tpu.memory_space<vmem>>, %arg9: memref<32x128xbf16, #tpu.memory_space<vmem>>, %arg10: memref<1x128xf32, #tpu.memory_space<vmem>>, %arg11: memref<128x32xbf16, #tpu.memory_space<vmem>>, %arg12: memref<1x32xf32, #tpu.memory_space<vmem>>, %arg13: memref<16x32xf32, #tpu.memory_space<vmem>>) attributes {dimension_semantics = [#tpu.dimension_semantics<parallel>], iteration_bounds = array<i64: 2>, scalar_prefetch = 0 : i64, scratch_operands = 0 : i64, tpu.core_type = #tpu.core_type<tc>, window_params = [{transform_indices = @transform_0, window_bounds = array<i64: 16, 32>}, {pipeline_mode = #tpu.pipeline_mode<synchronous>, transform_indices = @transform_1, window_bounds = array<i64: 1, 32>}, {pipeline_mode = #tpu.pipeline_mode<synchronous>, transform_indices = @transform_2, window_bounds = array<i64: 1, 32>}, {pipeline_mode = #tpu.pipeline_mode<synchronous>, transform_indices = @transform_3, window_bounds = array<i64: 96, 32>}, {pipeline_mode = #tpu.pipeline_mode<synchronous>, transform_indices = @transform_4, window_bounds = array<i64: 32, 32>}, {pipeline_mode = #tpu.pipeline_mode<synchronous>, transform_indices = @transform_5, window_bounds = array<i64: 8, 16, 16>}, {pipeline_mode = #tpu.pipeline_mode<synchronous>, transform_indices = @transform_6, window_bounds = array<i64: 1, 32>}, {pipeline_mode = #tpu.pipeline_mode<synchronous>, transform_indices = @transform_7, window_bounds = array<i64: 1, 32>}, {pipeline_mode = #tpu.pipeline_mode<synchronous>, transform_indices = @transform_8, window_bounds = array<i64: 32, 128>}, {pipeline_mode = #tpu.pipeline_mode<synchronous>, transform_indices = @transform_9, window_bounds = array<i64: 1, 128>}, {pipeline_mode = #tpu.pipeline_mode<synchronous>, transform_indices = @transform_10, window_bounds = array<i64: 128, 32>}, {pipeline_mode = #tpu.pipeline_mode<synchronous>, transform_indices = @transform_11, window_bounds = array<i64: 1, 32>}, {transform_indices = @transform_12, window_bounds = array<i64: 16, 32>}]} {
    %c0 = arith.constant 0 : index
    %c0_0 = arith.constant 0 : index
    %0 = vector.load %arg1[%c0, %c0_0] : memref<16x32xf32, #tpu.memory_space<vmem>>, vector<16x32xf32>
    %cst = arith.constant dense<0.000000e+00> : vector<16xf32>
    %1 = vector.multi_reduction <add>, %0, %cst [1] : vector<16x32xf32> to vector<16xf32>
    %2 = vector.shape_cast %1 : vector<16xf32> to vector<16x1xf32>
    %cst_1 = arith.constant 3.200000e+01 : f32
    %3 = vector.broadcast %cst_1 : f32 to vector<16x1xf32>
    %4 = arith.divf %2, %3 : vector<16x1xf32>
    %5 = vector.broadcast %4 : vector<16x1xf32> to vector<16x32xf32>
    %6 = arith.subf %0, %5 : vector<16x32xf32>
    %7 = arith.mulf %6, %6 : vector<16x32xf32>
    %cst_2 = arith.constant dense<0.000000e+00> : vector<16xf32>
    %8 = vector.multi_reduction <add>, %7, %cst_2 [1] : vector<16x32xf32> to vector<16xf32>
    %9 = vector.shape_cast %8 : vector<16xf32> to vector<16x1xf32>
    %cst_3 = arith.constant 3.200000e+01 : f32
    %10 = vector.broadcast %cst_3 : f32 to vector<16x1xf32>
    %11 = arith.divf %9, %10 : vector<16x1xf32>
    %12 = vector.broadcast %4 : vector<16x1xf32> to vector<16x32xf32>
    %13 = arith.subf %0, %12 : vector<16x32xf32>
    %cst_4 = arith.constant 9.99999974E-6 : f32
    %14 = vector.broadcast %cst_4 : f32 to vector<16x1xf32>
    %15 = arith.addf %11, %14 : vector<16x1xf32>
    %16 = math.rsqrt %15 : vector<16x1xf32>
    %17 = vector.broadcast %16 : vector<16x1xf32> to vector<16x32xf32>
    %18 = arith.mulf %13, %17 : vector<16x32xf32>
    %c0_5 = arith.constant 0 : index
    %c0_6 = arith.constant 0 : index
    %19 = vector.load %arg2[%c0_5, %c0_6] : memref<1x32xf32, #tpu.memory_space<vmem>>, vector<1x32xf32>
    %20 = vector.broadcast %19 : vector<1x32xf32> to vector<16x32xf32>
    %21 = arith.mulf %18, %20 : vector<16x32xf32>
    %c0_7 = arith.constant 0 : index
    %c0_8 = arith.constant 0 : index
    %22 = vector.load %arg3[%c0_7, %c0_8] : memref<1x32xf32, #tpu.memory_space<vmem>>, vector<1x32xf32>
    %23 = vector.broadcast %22 : vector<1x32xf32> to vector<16x32xf32>
    %24 = arith.addf %21, %23 : vector<16x32xf32>
    %25 = tpu.transpose %24, [1, 0] : vector<16x32xf32> -> vector<32x16xf32>
    %c0_9 = arith.constant 0 : index
    %c0_10 = arith.constant 0 : index
    %26 = vector.load %arg4[%c0_9, %c0_10] : memref<96x32xbf16, #tpu.memory_space<vmem>>, vector<96x32xbf16>
    %27 = arith.truncf %25 : vector<32x16xf32> to vector<32x16xbf16>
    %cst_11 = arith.constant dense<0.000000e+00> : vector<96x16xf32>
    %28 = tpu.matmul %26, %27, %cst_11 {dimension_numbers = #tpu.dot_dimension_numbers<[1], [0], [0], [1], [0, 0, 1, 1], [], []>} : vector<96x32xbf16>, vector<32x16xbf16>, vector<96x16xf32> -> vector<96x16xf32>
    %29 = vector.extract_strided_slice %28 {offsets = [0, 0], sizes = [32, 16], strides = [1, 1]} : vector<96x16xf32> to vector<32x16xf32>
    %30 = vector.shape_cast %29 : vector<32x16xf32> to vector<4x8x16xf32>
    %31 = vector.extract_strided_slice %28 {offsets = [32, 0], sizes = [32, 16], strides = [1, 1]} : vector<96x16xf32> to vector<32x16xf32>
    %32 = vector.shape_cast %31 : vector<32x16xf32> to vector<4x8x16xf32>
    %33 = vector.extract_strided_slice %28 {offsets = [64, 0], sizes = [32, 16], strides = [1, 1]} : vector<96x16xf32> to vector<32x16xf32>
    %34 = vector.shape_cast %33 : vector<32x16xf32> to vector<4x8x16xf32>
    %35 = vector.shape_cast %30 : vector<4x8x16xf32> to vector<4x8x16x1xf32>
    %36 = vector.shape_cast %32 : vector<4x8x16xf32> to vector<4x8x1x16xf32>
    %37 = vector.broadcast %35 : vector<4x8x16x1xf32> to vector<4x8x16x16xf32>
    %38 = vector.broadcast %36 : vector<4x8x1x16xf32> to vector<4x8x16x16xf32>
    %39 = arith.mulf %37, %38 : vector<4x8x16x16xf32>
    %cst_12 = arith.constant dense<0.000000e+00> : vector<4x16x16xf32>
    %40 = vector.multi_reduction <add>, %39, %cst_12 [1] : vector<4x8x16x16xf32> to vector<4x16x16xf32>
    %41 = vector.shape_cast %30 : vector<4x8x16xf32> to vector<4x8x16x1xf32>
    %c0_13 = arith.constant 0 : index
    %c0_14 = arith.constant 0 : index
    %c0_15 = arith.constant 0 : index
    %42 = vector.load %arg6[%c0_13, %c0_14, %c0_15] : memref<8x16x16xf32, #tpu.memory_space<vmem>>, vector<8x16x16xf32>
    %43 = vector.shape_cast %42 : vector<8x16x16xf32> to vector<1x8x16x16xf32>
    %44 = vector.broadcast %41 : vector<4x8x16x1xf32> to vector<4x8x16x16xf32>
    %45 = vector.broadcast %43 : vector<1x8x16x16xf32> to vector<4x8x16x16xf32>
    %46 = arith.mulf %44, %45 : vector<4x8x16x16xf32>
    %cst_16 = arith.constant dense<0.000000e+00> : vector<4x16x16xf32>
    %47 = vector.multi_reduction <add>, %46, %cst_16 [1] : vector<4x8x16x16xf32> to vector<4x16x16xf32>
    %48 = arith.addf %40, %47 : vector<4x16x16xf32>
    %cst_17 = arith.constant 0.176776692 : f32
    %49 = vector.broadcast %cst_17 : f32 to vector<4x16x16xf32>
    %50 = arith.mulf %48, %49 : vector<4x16x16xf32>
    %cst_18 = arith.constant dense<0xFF800000> : vector<4x16xf32>
    %51 = vector.multi_reduction <maximumf>, %50, %cst_18 [2] : vector<4x16x16xf32> to vector<4x16xf32>
    %52 = vector.shape_cast %51 : vector<4x16xf32> to vector<4x16x1xf32>
    %53 = vector.broadcast %52 : vector<4x16x1xf32> to vector<4x16x16xf32>
    %54 = arith.subf %50, %53 : vector<4x16x16xf32>
    %55 = math.exp %54 : vector<4x16x16xf32>
    %cst_19 = arith.constant dense<0.000000e+00> : vector<4x16xf32>
    %56 = vector.multi_reduction <add>, %55, %cst_19 [2] : vector<4x16x16xf32> to vector<4x16xf32>
    %57 = vector.shape_cast %56 : vector<4x16xf32> to vector<4x16x1xf32>
    %58 = tpu.reciprocal %57 {approx = true} : vector<4x16x1xf32> -> vector<4x16x1xf32>
    %59 = vector.broadcast %58 : vector<4x16x1xf32> to vector<4x16x16xf32>
    %60 = arith.mulf %55, %59 : vector<4x16x16xf32>
    %61 = vector.shape_cast %60 : vector<4x16x16xf32> to vector<4x1x16x16xf32>
    %62 = vector.shape_cast %34 : vector<4x8x16xf32> to vector<4x8x1x16xf32>
    %63 = vector.broadcast %61 : vector<4x1x16x16xf32> to vector<4x8x16x16xf32>
    %64 = vector.broadcast %62 : vector<4x8x1x16xf32> to vector<4x8x16x16xf32>
    %65 = arith.mulf %63, %64 : vector<4x8x16x16xf32>
    %cst_20 = arith.constant dense<0.000000e+00> : vector<4x8x16xf32>
    %66 = vector.multi_reduction <add>, %65, %cst_20 [3] : vector<4x8x16x16xf32> to vector<4x8x16xf32>
    %67 = vector.shape_cast %66 : vector<4x8x16xf32> to vector<32x16xf32>
    %68 = tpu.transpose %67, [1, 0] : vector<32x16xf32> -> vector<16x32xf32>
    %69 = arith.truncf %68 : vector<16x32xf32> to vector<16x32xbf16>
    %c0_21 = arith.constant 0 : index
    %c0_22 = arith.constant 0 : index
    %70 = vector.load %arg5[%c0_21, %c0_22] : memref<32x32xbf16, #tpu.memory_space<vmem>>, vector<32x32xbf16>
    %cst_23 = arith.constant dense<0.000000e+00> : vector<16x32xf32>
    %71 = tpu.matmul %69, %70, %cst_23 {dimension_numbers = #tpu.dot_dimension_numbers<[1], [0], [0], [1], [0, 0, 1, 1], [], []>} : vector<16x32xbf16>, vector<32x32xbf16>, vector<16x32xf32> -> vector<16x32xf32>
    %72 = arith.addf %0, %71 : vector<16x32xf32>
    %cst_24 = arith.constant dense<0.000000e+00> : vector<16xf32>
    %73 = vector.multi_reduction <add>, %72, %cst_24 [1] : vector<16x32xf32> to vector<16xf32>
    %74 = vector.shape_cast %73 : vector<16xf32> to vector<16x1xf32>
    %cst_25 = arith.constant 3.200000e+01 : f32
    %75 = vector.broadcast %cst_25 : f32 to vector<16x1xf32>
    %76 = arith.divf %74, %75 : vector<16x1xf32>
    %77 = vector.broadcast %76 : vector<16x1xf32> to vector<16x32xf32>
    %78 = arith.subf %72, %77 : vector<16x32xf32>
    %79 = arith.mulf %78, %78 : vector<16x32xf32>
    %cst_26 = arith.constant dense<0.000000e+00> : vector<16xf32>
    %80 = vector.multi_reduction <add>, %79, %cst_26 [1] : vector<16x32xf32> to vector<16xf32>
    %81 = vector.shape_cast %80 : vector<16xf32> to vector<16x1xf32>
    %cst_27 = arith.constant 3.200000e+01 : f32
    %82 = vector.broadcast %cst_27 : f32 to vector<16x1xf32>
    %83 = arith.divf %81, %82 : vector<16x1xf32>
    %84 = vector.broadcast %76 : vector<16x1xf32> to vector<16x32xf32>
    %85 = arith.subf %72, %84 : vector<16x32xf32>
    %cst_28 = arith.constant 9.99999974E-6 : f32
    %86 = vector.broadcast %cst_28 : f32 to vector<16x1xf32>
    %87 = arith.addf %83, %86 : vector<16x1xf32>
    %88 = math.rsqrt %87 : vector<16x1xf32>
    %89 = vector.broadcast %88 : vector<16x1xf32> to vector<16x32xf32>
    %90 = arith.mulf %85, %89 : vector<16x32xf32>
    %c0_29 = arith.constant 0 : index
    %c0_30 = arith.constant 0 : index
    %91 = vector.load %arg7[%c0_29, %c0_30] : memref<1x32xf32, #tpu.memory_space<vmem>>, vector<1x32xf32>
    %92 = vector.broadcast %91 : vector<1x32xf32> to vector<16x32xf32>
    %93 = arith.mulf %90, %92 : vector<16x32xf32>
    %c0_31 = arith.constant 0 : index
    %c0_32 = arith.constant 0 : index
    %94 = vector.load %arg8[%c0_31, %c0_32] : memref<1x32xf32, #tpu.memory_space<vmem>>, vector<1x32xf32>
    %95 = vector.broadcast %94 : vector<1x32xf32> to vector<16x32xf32>
    %96 = arith.addf %93, %95 : vector<16x32xf32>
    %97 = arith.truncf %96 : vector<16x32xf32> to vector<16x32xbf16>
    %c0_33 = arith.constant 0 : index
    %c0_34 = arith.constant 0 : index
    %98 = vector.load %arg9[%c0_33, %c0_34] : memref<32x128xbf16, #tpu.memory_space<vmem>>, vector<32x128xbf16>
    %cst_35 = arith.constant dense<0.000000e+00> : vector<16x128xf32>
    %99 = tpu.matmul %97, %98, %cst_35 {dimension_numbers = #tpu.dot_dimension_numbers<[1], [0], [0], [1], [0, 0, 1, 1], [], []>} : vector<16x32xbf16>, vector<32x128xbf16>, vector<16x128xf32> -> vector<16x128xf32>
    %c0_36 = arith.constant 0 : index
    %c0_37 = arith.constant 0 : index
    %100 = vector.load %arg10[%c0_36, %c0_37] : memref<1x128xf32, #tpu.memory_space<vmem>>, vector<1x128xf32>
    %101 = vector.broadcast %100 : vector<1x128xf32> to vector<16x128xf32>
    %102 = arith.addf %99, %101 : vector<16x128xf32>
    %cst_38 = arith.constant 0.000000e+00 : f32
    %103 = vector.broadcast %cst_38 : f32 to vector<16x128xf32>
    %104 = arith.cmpf oge, %102, %103 : vector<16x128xf32>
    %cst_39 = arith.constant 2.000000e-01 : f32
    %105 = vector.broadcast %cst_39 : f32 to vector<16x128xf32>
    %106 = arith.mulf %105, %102 : vector<16x128xf32>
    %107 = arith.select %104, %102, %106 : vector<16x128xi1>, vector<16x128xf32>
    %108 = arith.truncf %107 : vector<16x128xf32> to vector<16x128xbf16>
    %c0_40 = arith.constant 0 : index
    %c0_41 = arith.constant 0 : index
    %109 = vector.load %arg11[%c0_40, %c0_41] : memref<128x32xbf16, #tpu.memory_space<vmem>>, vector<128x32xbf16>
    %cst_42 = arith.constant dense<0.000000e+00> : vector<16x32xf32>
    %110 = tpu.matmul %108, %109, %cst_42 {dimension_numbers = #tpu.dot_dimension_numbers<[1], [0], [0], [1], [0, 0, 1, 1], [], []>} : vector<16x128xbf16>, vector<128x32xbf16>, vector<16x32xf32> -> vector<16x32xf32>
    %c0_43 = arith.constant 0 : index
    %c0_44 = arith.constant 0 : index
    %111 = vector.load %arg12[%c0_43, %c0_44] : memref<1x32xf32, #tpu.memory_space<vmem>>, vector<1x32xf32>
    %112 = vector.broadcast %111 : vector<1x32xf32> to vector<16x32xf32>
    %113 = arith.addf %110, %112 : vector<16x32xf32>
    %114 = arith.addf %72, %113 : vector<16x32xf32>
    %c0_45 = arith.constant 0 : index
    %c0_46 = arith.constant 0 : index
    %115 = vector.load %arg13[%c0_45, %c0_46] : memref<16x32xf32, #tpu.memory_space<vmem>>, vector<16x32xf32>
    tpu.vector_store %arg13[%c0_45, %c0_46], %114 {strides = array<i32>} : memref<16x32xf32, #tpu.memory_space<vmem>>, vector<16x32xf32>,
    return
  }
  func.func @transform_0(%arg0: i32) -> (i32, i32) {
    %c0_i32 = arith.constant 0 : i32
    %c0_i32_0 = arith.constant 0 : i32
    return %arg0, %c0_i32 : i32, i32
  }
  func.func @transform_1(%arg0: i32) -> (i32, i32) {
    %c0_i32 = arith.constant 0 : i32
    %c0_i32_0 = arith.constant 0 : i32
    %c0_i32_1 = arith.constant 0 : i32
    return %c0_i32, %c0_i32_0 : i32, i32
  }
  func.func @transform_2(%arg0: i32) -> (i32, i32) {
    %c0_i32 = arith.constant 0 : i32
    %c0_i32_0 = arith.constant 0 : i32
    %c0_i32_1 = arith.constant 0 : i32
    return %c0_i32, %c0_i32_0 : i32, i32
  }
  func.func @transform_3(%arg0: i32) -> (i32, i32) {
    %c0_i32 = arith.constant 0 : i32
    %c0_i32_0 = arith.constant 0 : i32
    %c0_i32_1 = arith.constant 0 : i32
    return %c0_i32, %c0_i32_0 : i32, i32
  }
  func.func @transform_4(%arg0: i32) -> (i32, i32) {
    %c0_i32 = arith.constant 0 : i32
    %c0_i32_0 = arith.constant 0 : i32
    %c0_i32_1 = arith.constant 0 : i32
    return %c0_i32, %c0_i32_0 : i32, i32
  }
  func.func @transform_5(%arg0: i32) -> (i32, i32, i32) {
    %c0_i32 = arith.constant 0 : i32
    %c0_i32_0 = arith.constant 0 : i32
    %c0_i32_1 = arith.constant 0 : i32
    %c0_i32_2 = arith.constant 0 : i32
    return %c0_i32, %c0_i32_0, %c0_i32_1 : i32, i32, i32
  }
  func.func @transform_6(%arg0: i32) -> (i32, i32) {
    %c0_i32 = arith.constant 0 : i32
    %c0_i32_0 = arith.constant 0 : i32
    %c0_i32_1 = arith.constant 0 : i32
    return %c0_i32, %c0_i32_0 : i32, i32
  }
  func.func @transform_7(%arg0: i32) -> (i32, i32) {
    %c0_i32 = arith.constant 0 : i32
    %c0_i32_0 = arith.constant 0 : i32
    %c0_i32_1 = arith.constant 0 : i32
    return %c0_i32, %c0_i32_0 : i32, i32
  }
  func.func @transform_8(%arg0: i32) -> (i32, i32) {
    %c0_i32 = arith.constant 0 : i32
    %c0_i32_0 = arith.constant 0 : i32
    %c0_i32_1 = arith.constant 0 : i32
    return %c0_i32, %c0_i32_0 : i32, i32
  }
  func.func @transform_9(%arg0: i32) -> (i32, i32) {
    %c0_i32 = arith.constant 0 : i32
    %c0_i32_0 = arith.constant 0 : i32
    %c0_i32_1 = arith.constant 0 : i32
    return %c0_i32, %c0_i32_0 : i32, i32
  }
  func.func @transform_10(%arg0: i32) -> (i32, i32) {
    %c0_i32 = arith.constant 0 : i32
    %c0_i32_0 = arith.constant 0 : i32
    %c0_i32_1 = arith.constant 0 : i32
    return %c0_i32, %c0_i32_0 : i32, i32
  }
  func.func @transform_11(%arg0: i32) -> (i32, i32) {
    %c0_i32 = arith.constant 0 : i32
    %c0_i32_0 = arith.constant 0 : i32
    %c0_i32_1 = arith.constant 0 : i32
    return %c0_i32, %c0_i32_0 : i32, i32
  }
  func.func @transform_12(%arg0: i32) -> (i32, i32) {
    %c0_i32 = arith.constant 0 : i32
    %c0_i32_0 = arith.constant 0 : i32
    return %arg0, %c0_i32 : i32, i32
  }
}

</mosaic_0001>

<llo_original>
// kernel: tpu_custom_call.1
$region0: #{tpu_custom_call.1}
  #allocation0 [shape = 'u32[]', space=smem, size = 0x4, offset = 0x4, fixed_abs, tag = 'smem constant byte address 0x4 - core index']
  #allocation1 [shape = 'u32[72,128]{1,0:T(1,128)}', space=vmem, size = 0x9000, scoped, tag = 'internal scratch']
  %s0 = inlined_call_operand.hbm [shape: f32[32,32], index: 0, kind: input, shape index: {}]
  %s1 = inlined_call_operand.hbm [shape: f32[1,32], index: 1, kind: input, shape index: {}]
  %s2 = inlined_call_operand.vmem [shape: f32[1,32], index: 2, kind: input, shape index: {}]
  %s3 = inlined_call_operand.vmem [shape: bf16[96,32], index: 3, kind: input, shape index: {}]
  %s4 = inlined_call_operand.hbm [shape: bf16[32,32], index: 4, kind: input, shape index: {}]
  %s5 = inlined_call_operand.vmem [shape: f32[8,16,16], index: 5, kind: input, shape index: {}]
  %s6 = inlined_call_operand.vmem [shape: f32[1,32], index: 6, kind: input, shape index: {}]
  %s7 = inlined_call_operand.vmem [shape: f32[1,32], index: 7, kind: input, shape index: {}]
  %s8 = inlined_call_operand.hbm [shape: bf16[32,128], index: 8, kind: input, shape index: {}]
  %s9 = inlined_call_operand.vmem [shape: f32[1,128], index: 9, kind: input, shape index: {}]
  %s10 = inlined_call_operand.vmem [shape: bf16[128,32], index: 10, kind: input, shape index: {}]
  %s11 = inlined_call_operand.vmem [shape: f32[1,32], index: 11, kind: input, shape index: {}]
  %s12 = inlined_call_operand.hbm [shape: f32[32,32], index: 12, kind: output, shape index: {}]
  %s13 = sld [smem:[#allocation0]]
  $region97: #{tpu_custom_call.1} parent=0
    _
  %s15 = ssub.s32 1, %s13
  %s16 = scalar_select 0, %s15, %s13
  $region1: #{tpu_custom_call.1} parent=0
    #allocation2 [shape = 'u8[16384]{0}', space=vmem, size = 0x4000, scoped, tag = 'input window, operand 0']
    #allocation3 [shape = 's32[2]{0}', space=sflag, size = 0x8, scoped, tag = 'scoped memory for tpu_custom_call.1']
    #allocation4 [shape = 's32[2]{0}', space=sflag, size = 0x8, scoped, tag = 'scoped memory for tpu_custom_call.1']
    #allocation5 [shape = 'u8[512]{0}', space=vmem, size = 0x400, scoped, tag = 'input window, operand 1, single buffered']
    #allocation6 [shape = 's32[1]{0}', space=sflag, size = 0x4, scoped, tag = 'scoped memory for tpu_custom_call.1']
    #allocation7 [shape = 'u8[8192]{0}', space=vmem, size = 0x2000, scoped, tag = 'input window, operand 4, single buffered']
    #allocation8 [shape = 'u8[8192]{0}', space=vmem, size = 0x2000, scoped, tag = 'input window, operand 8, single buffered']
    #allocation9 [shape = 's32[1]{0}', space=sflag, size = 0x4, scoped, tag = 'scoped memory for tpu_custom_call.1']
    #allocation10 [shape = 'u8[16384]{0}', space=vmem, size = 0x4000, scoped, tag = 'output window, operand 0']
    %17 = vsyncpa [#allocation3], 0
    %s18 = scalar_lea.sflag [#allocation3], 1
    %19 = vsyncpa %s18, 0
    %20 = vsyncpa [#allocation6], 0
    %21 = vsyncpa [#allocation9], 0
    %22 = vsyncpa [#allocation4], 0
    %s23 = scalar_lea.sflag [#allocation4], 1
    %24 = vsyncpa %s23, 0
    loop: start=0, step=1, limit=4
    $region2: #{tpu_custom_call.1} parent=1 // loop_pre_header
      _
    $region3: #{tpu_custom_call.1} parent=1 // loop_header
      %s26 = sphi 0, %s30
      %p27 = scmp.ge.s32.totalorder %s26, 4
      %s36 = sphi 0, %s38
      %s39 = sphi 0, %s36
      %s40 = sphi 0, %s39
      %s56 = sphi 0, %s40
      %s60 = sphi 0, %s60
      %s62 = sphi 0, %s60
      %s63 = sphi 0, %s62
      %s77 = sphi 0, %s63
      %s81 = sphi 0, %s81
      %s83 = sphi 0, %s81
      %s84 = sphi 0, %s83
      %s98 = sphi 0, %s84
      %s102 = sphi 0, %s102
      %s104 = sphi 0, %s102
      %s105 = sphi 0, %s104
      %s119 = sphi 0, %s105
      %s123 = sphi 0, %s123
      %s125 = sphi 0, %s123
      %s126 = sphi 0, %s125
      %s140 = sphi 0, %s126
      %s144 = sphi 0, %s144
      %s146 = sphi 0, %s144
      %s147 = sphi 0, %s146
      %s161 = sphi 0, %s147
      %s165 = sphi 0, %s165
      %s167 = sphi 0, %s165
      %s168 = sphi 0, %s167
      %s182 = sphi 0, %s168
      %s186 = sphi 0, %s186
      %s188 = sphi 0, %s186
      %s189 = sphi 0, %s188
      %s203 = sphi 0, %s189
      %s207 = sphi 0, %s207
      %s209 = sphi 0, %s207
      %s210 = sphi 0, %s209
      %s224 = sphi 0, %s210
      %s228 = sphi 0, %s228
      %s230 = sphi 0, %s228
      %s231 = sphi 0, %s230
      %s245 = sphi 0, %s231
      %s249 = sphi 0, %s249
      %s251 = sphi 0, %s249
      %s252 = sphi 0, %s251
      %s266 = sphi 0, %s252
      %s270 = sphi 0, %s270
      %s272 = sphi 0, %s270
      %s273 = sphi 0, %s272
      %s287 = sphi 0, %s273
      %s293 = sphi 0, %s295
      %s296 = sphi 0, %s293
      %s297 = sphi 0, %s296
      %s313 = sphi 0, %s297
    $region4: #{tpu_custom_call.1} parent=1 // loop_header_branch
      %29 = sbr.rel (%p27) target = $region8
    $region5: #{tpu_custom_call.1} parent=1 // loop_body
      %s31 = ssub.s32 %s26, 1
      %s32 = ssub.s32 %s26, 2
      %s33 = sadd.s32 %s26, 1
      %s34 = ssub.s32 %s26, %s33
      %p35 = scmp.eq.s32.totalorder %s34, 0
      %s37 = sadd.s32 %s36, 1
      %s38 = scalar_select %p35, %s36, %s37
      %p41 = pneg %p35
      %p42 = scmp.eq.s32.totalorder %s26, 1
      %p43 = por %p41, %p42
      %p44 = scmp.ne.s32.totalorder %s36, %s39
      %p45 = scmp.eq.s32.totalorder %s26, 0
      %p46 = por %p44, %p45
      %p47 = scmp.ne.s32.totalorder %s36, %s39
      %p48 = scmp.eq.s32.totalorder %s31, 1
      %p49 = por %p47, %p48
      %p50 = scmp.ne.s32.totalorder %s39, %s40
      %p51 = scmp.eq.s32.totalorder %s31, 0
      %p52 = por %p50, %p51
      %p53 = scmp.ne.s32.totalorder %s39, %s40
      %p54 = scmp.eq.s32.totalorder %s32, 1
      %p55 = por %p53, %p54
      %p57 = scmp.ne.s32.totalorder %s40, %s56
      %p58 = scmp.eq.s32.totalorder %s32, 0
      %p59 = por %p57, %p58
      %s61 = sadd.s32 %s60, 1
      %p64 = scmp.eq.s32.totalorder %s26, 1
      %p65 = scmp.ne.s32.totalorder %s60, %s62
      %p66 = scmp.eq.s32.totalorder %s26, 0
      %p67 = por %p65, %p66
      %p68 = scmp.ne.s32.totalorder %s60, %s62
      %p69 = scmp.eq.s32.totalorder %s31, 1
      %p70 = por %p68, %p69
      %p71 = scmp.ne.s32.totalorder %s62, %s63
      %p72 = scmp.eq.s32.totalorder %s31, 0
      %p73 = por %p71, %p72
      %p74 = scmp.ne.s32.totalorder %s62, %s63
      %p75 = scmp.eq.s32.totalorder %s32, 1
      %p76 = por %p74, %p75
      %p78 = scmp.ne.s32.totalorder %s63, %s77
      %p79 = scmp.eq.s32.totalorder %s32, 0
      %p80 = por %p78, %p79
      %s82 = sadd.s32 %s81, 1
      %p85 = scmp.eq.s32.totalorder %s26, 1
      %p86 = scmp.ne.s32.totalorder %s81, %s83
      %p87 = scmp.eq.s32.totalorder %s26, 0
      %p88 = por %p86, %p87
      %p89 = scmp.ne.s32.totalorder %s81, %s83
      %p90 = scmp.eq.s32.totalorder %s31, 1
      %p91 = por %p89, %p90
      %p92 = scmp.ne.s32.totalorder %s83, %s84
      %p93 = scmp.eq.s32.totalorder %s31, 0
      %p94 = por %p92, %p93
      %p95 = scmp.ne.s32.totalorder %s83, %s84
      %p96 = scmp.eq.s32.totalorder %s32, 1
      %p97 = por %p95, %p96
      %p99 = scmp.ne.s32.totalorder %s84, %s98
      %p100 = scmp.eq.s32.totalorder %s32, 0
      %p101 = por %p99, %p100
      %s103 = sadd.s32 %s102, 1
      %p106 = scmp.eq.s32.totalorder %s26, 1
      %p107 = scmp.ne.s32.totalorder %s102, %s104
      %p108 = scmp.eq.s32.totalorder %s26, 0
      %p109 = por %p107, %p108
      %p110 = scmp.ne.s32.totalorder %s102, %s104
      %p111 = scmp.eq.s32.totalorder %s31, 1
      %p112 = por %p110, %p111
      %p113 = scmp.ne.s32.totalorder %s104, %s105
      %p114 = scmp.eq.s32.totalorder %s31, 0
      %p115 = por %p113, %p114
      %p116 = scmp.ne.s32.totalorder %s104, %s105
      %p117 = scmp.eq.s32.totalorder %s32, 1
      %p118 = por %p116, %p117
      %p120 = scmp.ne.s32.totalorder %s105, %s119
      %p121 = scmp.eq.s32.totalorder %s32, 0
      %p122 = por %p120, %p121
      %s124 = sadd.s32 %s123, 1
      %p127 = scmp.eq.s32.totalorder %s26, 1
      %p128 = scmp.ne.s32.totalorder %s123, %s125
      %p129 = scmp.eq.s32.totalorder %s26, 0
      %p130 = por %p128, %p129
      %p131 = scmp.ne.s32.totalorder %s123, %s125
      %p132 = scmp.eq.s32.totalorder %s31, 1
      %p133 = por %p131, %p132
      %p134 = scmp.ne.s32.totalorder %s125, %s126
      %p135 = scmp.eq.s32.totalorder %s31, 0
      %p136 = por %p134, %p135
      %p137 = scmp.ne.s32.totalorder %s125, %s126
      %p138 = scmp.eq.s32.totalorder %s32, 1
      %p139 = por %p137, %p138
      %p141 = scmp.ne.s32.totalorder %s126, %s140
      %p142 = scmp.eq.s32.totalorder %s32, 0
      %p143 = por %p141, %p142
      %s145 = sadd.s32 %s144, 1
      %p148 = scmp.eq.s32.totalorder %s26, 1
      %p149 = scmp.ne.s32.totalorder %s144, %s146
      %p150 = scmp.eq.s32.totalorder %s26, 0
      %p151 = por %p149, %p150
      %p152 = scmp.ne.s32.totalorder %s144, %s146
      %p153 = scmp.eq.s32.totalorder %s31, 1
      %p154 = por %p152, %p153
      %p155 = scmp.ne.s32.totalorder %s146, %s147
      %p156 = scmp.eq.s32.totalorder %s31, 0
      %p157 = por %p155, %p156
      %p158 = scmp.ne.s32.totalorder %s146, %s147
      %p159 = scmp.eq.s32.totalorder %s32, 1
      %p160 = por %p158, %p159
      %p162 = scmp.ne.s32.totalorder %s147, %s161
      %p163 = scmp.eq.s32.totalorder %s32, 0
      %p164 = por %p162, %p163
      %s166 = sadd.s32 %s165, 1
      %p169 = scmp.eq.s32.totalorder %s26, 1
      %p170 = scmp.ne.s32.totalorder %s165, %s167
      %p171 = scmp.eq.s32.totalorder %s26, 0
      %p172 = por %p170, %p171
      %p173 = scmp.ne.s32.totalorder %s165, %s167
      %p174 = scmp.eq.s32.totalorder %s31, 1
      %p175 = por %p173, %p174
      %p176 = scmp.ne.s32.totalorder %s167, %s168
      %p177 = scmp.eq.s32.totalorder %s31, 0
      %p178 = por %p176, %p177
      %p179 = scmp.ne.s32.totalorder %s167, %s168
      %p180 = scmp.eq.s32.totalorder %s32, 1
      %p181 = por %p179, %p180
      %p183 = scmp.ne.s32.totalorder %s168, %s182
      %p184 = scmp.eq.s32.totalorder %s32, 0
      %p185 = por %p183, %p184
      %s187 = sadd.s32 %s186, 1
      %p190 = scmp.eq.s32.totalorder %s26, 1
      %p191 = scmp.ne.s32.totalorder %s186, %s188
      %p192 = scmp.eq.s32.totalorder %s26, 0
      %p193 = por %p191, %p192
      %p194 = scmp.ne.s32.totalorder %s186, %s188
      %p195 = scmp.eq.s32.totalorder %s31, 1
      %p196 = por %p194, %p195
      %p197 = scmp.ne.s32.totalorder %s188, %s189
      %p198 = scmp.eq.s32.totalorder %s31, 0
      %p199 = por %p197, %p198
      %p200 = scmp.ne.s32.totalorder %s188, %s189
      %p201 = scmp.eq.s32.totalorder %s32, 1
      %p202 = por %p200, %p201
      %p204 = scmp.ne.s32.totalorder %s189, %s203
      %p205 = scmp.eq.s32.totalorder %s32, 0
      %p206 = por %p204, %p205
      %s208 = sadd.s32 %s207, 1
      %p211 = scmp.eq.s32.totalorder %s26, 1
      %p212 = scmp.ne.s32.totalorder %s207, %s209
      %p213 = scmp.eq.s32.totalorder %s26, 0
      %p214 = por %p212, %p213
      %p215 = scmp.ne.s32.totalorder %s207, %s209
      %p216 = scmp.eq.s32.totalorder %s31, 1
      %p217 = por %p215, %p216
      %p218 = scmp.ne.s32.totalorder %s209, %s210
      %p219 = scmp.eq.s32.totalorder %s31, 0
      %p220 = por %p218, %p219
      %p221 = scmp.ne.s32.totalorder %s209, %s210
      %p222 = scmp.eq.s32.totalorder %s32, 1
      %p223 = por %p221, %p222
      %p225 = scmp.ne.s32.totalorder %s210, %s224
      %p226 = scmp.eq.s32.totalorder %s32, 0
      %p227 = por %p225, %p226
      %s229 = sadd.s32 %s228, 1
      %p232 = scmp.eq.s32.totalorder %s26, 1
      %p233 = scmp.ne.s32.totalorder %s228, %s230
      %p234 = scmp.eq.s32.totalorder %s26, 0
      %p235 = por %p233, %p234
      %p236 = scmp.ne.s32.totalorder %s228, %s230
      %p237 = scmp.eq.s32.totalorder %s31, 1
      %p238 = por %p236, %p237
      %p239 = scmp.ne.s32.totalorder %s230, %s231
      %p240 = scmp.eq.s32.totalorder %s31, 0
      %p241 = por %p239, %p240
      %p242 = scmp.ne.s32.totalorder %s230, %s231
      %p243 = scmp.eq.s32.totalorder %s32, 1
      %p244 = por %p242, %p243
      %p246 = scmp.ne.s32.totalorder %s231, %s245
      %p247 = scmp.eq.s32.totalorder %s32, 0
      %p248 = por %p246, %p247
      %s250 = sadd.s32 %s249, 1
      %p253 = scmp.eq.s32.totalorder %s26, 1
      %p254 = scmp.ne.s32.totalorder %s249, %s251
      %p255 = scmp.eq.s32.totalorder %s26, 0
      %p256 = por %p254, %p255
      %p257 = scmp.ne.s32.totalorder %s249, %s251
      %p258 = scmp.eq.s32.totalorder %s31, 1
      %p259 = por %p257, %p258
      %p260 = scmp.ne.s32.totalorder %s251, %s252
      %p261 = scmp.eq.s32.totalorder %s31, 0
      %p262 = por %p260, %p261
      %p263 = scmp.ne.s32.totalorder %s251, %s252
      %p264 = scmp.eq.s32.totalorder %s32, 1
      %p265 = por %p263, %p264
      %p267 = scmp.ne.s32.totalorder %s252, %s266
      %p268 = scmp.eq.s32.totalorder %s32, 0
      %p269 = por %p267, %p268
      %s271 = sadd.s32 %s270, 1
      %p274 = scmp.eq.s32.totalorder %s26, 1
      %p275 = scmp.ne.s32.totalorder %s270, %s272
      %p276 = scmp.eq.s32.totalorder %s26, 0
      %p277 = por %p275, %p276
      %p278 = scmp.ne.s32.totalorder %s270, %s272
      %p279 = scmp.eq.s32.totalorder %s31, 1
      %p280 = por %p278, %p279
      %p281 = scmp.ne.s32.totalorder %s272, %s273
      %p282 = scmp.eq.s32.totalorder %s31, 0
      %p283 = por %p281, %p282
      %p284 = scmp.ne.s32.totalorder %s272, %s273
      %p285 = scmp.eq.s32.totalorder %s32, 1
      %p286 = por %p284, %p285
      %p288 = scmp.ne.s32.totalorder %s273, %s287
      %p289 = scmp.eq.s32.totalorder %s32, 0
      %p290 = por %p288, %p289
      %s291 = ssub.s32 %s26, %s33
      %p292 = scmp.eq.s32.totalorder %s291, 0
      %s294 = sadd.s32 %s293, 1
      %s295 = scalar_select %p292, %s293, %s294
      %p298 = pneg %p292
      %p299 = scmp.eq.s32.totalorder %s26, 1
      %p300 = por %p298, %p299
      %p301 = scmp.ne.s32.totalorder %s293, %s296
      %p302 = scmp.eq.s32.totalorder %s26, 0
      %p303 = por %p301, %p302
      %p304 = scmp.ne.s32.totalorder %s293, %s296
      %p305 = scmp.eq.s32.totalorder %s31, 1
      %p306 = por %p304, %p305
      %p307 = scmp.ne.s32.totalorder %s296, %s297
      %p308 = scmp.eq.s32.totalorder %s31, 0
      %p309 = por %p307, %p308
      %p310 = scmp.ne.s32.totalorder %s296, %s297
      %p311 = scmp.eq.s32.totalorder %s32, 1
      %p312 = por %p310, %p311
      %p314 = scmp.ne.s32.totalorder %s297, %s313
      %p315 = scmp.eq.s32.totalorder %s32, 0
      %p316 = por %p314, %p315
      %p317 = scmp.le.s32.totalorder 1, %s26
      %p318 = scmp.lt.s32.totalorder %s26, 3
      %p319 = pnand %p317, %p318
      %p320 = pneg %p319
      // Predicated region
      $region9: #{tpu_custom_call.1} parent=5 // pred_check
        _
      $region10: #{tpu_custom_call.1} parent=5 // pred_check_branch
        %322 = sbr.rel (%p319) target = $region12
      $region11: #{tpu_custom_call.1} parent=5 // pred_region
        %s323 = ssub.s32 %s26, 1
        // Predicated region
        $region13: #{tpu_custom_call.1} parent=11 // pred_check
          %p324 = pneg %p73
        $region14: #{tpu_custom_call.1} parent=11 // pred_check_branch
          %326 = sbr.rel (%p324) target = $region16
        $region15: #{tpu_custom_call.1} parent=11 // pred_region
          %328 = vsyncadd [#allocation6], 0
          %s330 = sshll.u32 %s1, 4
          %s331 = int_to_ptr.hbm [resolvable:$true] %s330
          %s332 = sshll.u32 [#allocation5], 4
          %s333 = int_to_ptr.vmem [resolvable:$true] %s332
          %335 = dma.hbm_to_vmem [thread:$0]  %s331, 16, %s333, [#allocation6]
        $region16: #{tpu_custom_call.1} parent=11 // pred_fallthru
          _
        // Predicated region
        $region17: #{tpu_custom_call.1} parent=11 // pred_check
          %p336 = pneg %p94
        $region18: #{tpu_custom_call.1} parent=11 // pred_check_branch
          %338 = sbr.rel (%p336) target = $region20
        $region19: #{tpu_custom_call.1} parent=11 // pred_region
          _
        $region20: #{tpu_custom_call.1} parent=11 // pred_fallthru
          _
        // Predicated region
        $region21: #{tpu_custom_call.1} parent=11 // pred_check
          %p339 = pneg %p115
        $region22: #{tpu_custom_call.1} parent=11 // pred_check_branch
          %341 = sbr.rel (%p339) target = $region24
        $region23: #{tpu_custom_call.1} parent=11 // pred_region
          _
        $region24: #{tpu_custom_call.1} parent=11 // pred_fallthru
          _
        // Predicated region
        $region25: #{tpu_custom_call.1} parent=11 // pred_check
          %p342 = pneg %p136
        $region26: #{tpu_custom_call.1} parent=11 // pred_check_branch
          %344 = sbr.rel (%p342) target = $region28
        $region27: #{tpu_custom_call.1} parent=11 // pred_region
          %346 = vsyncadd [#allocation6], 0
          %s347 = sshll.u32 %s4, 4
          %s348 = int_to_ptr.hbm [resolvable:$true] %s347
          %s349 = sshll.u32 [#allocation7], 4
          %s350 = int_to_ptr.vmem [resolvable:$true] %s349
          %355 = dma.hbm_to_vmem [thread:$0]  %s348, 256, %s350, [#allocation6], 64, 64, 4
        $region28: #{tpu_custom_call.1} parent=11 // pred_fallthru
          _
        // Predicated region
        $region29: #{tpu_custom_call.1} parent=11 // pred_check
          %p356 = pneg %p157
        $region30: #{tpu_custom_call.1} parent=11 // pred_check_branch
          %358 = sbr.rel (%p356) target = $region32
        $region31: #{tpu_custom_call.1} parent=11 // pred_region
          _
        $region32: #{tpu_custom_call.1} parent=11 // pred_fallthru
          _
        // Predicated region
        $region33: #{tpu_custom_call.1} parent=11 // pred_check
          %p359 = pneg %p178
        $region34: #{tpu_custom_call.1} parent=11 // pred_check_branch
          %361 = sbr.rel (%p359) target = $region36
        $region35: #{tpu_custom_call.1} parent=11 // pred_region
          _
        $region36: #{tpu_custom_call.1} parent=11 // pred_fallthru
          _
        // Predicated region
        $region37: #{tpu_custom_call.1} parent=11 // pred_check
          %p362 = pneg %p199
        $region38: #{tpu_custom_call.1} parent=11 // pred_check_branch
          %364 = sbr.rel (%p362) target = $region40
        $region39: #{tpu_custom_call.1} parent=11 // pred_region
          _
        $region40: #{tpu_custom_call.1} parent=11 // pred_fallthru
          _
        // Predicated region
        $region41: #{tpu_custom_call.1} parent=11 // pred_check
          %p365 = pneg %p220
        $region42: #{tpu_custom_call.1} parent=11 // pred_check_branch
          %367 = sbr.rel (%p365) target = $region44
        $region43: #{tpu_custom_call.1} parent=11 // pred_region
          %369 = vsyncadd [#allocation9], 0
          %s370 = sshll.u32 %s8, 4
          %s371 = int_to_ptr.hbm [resolvable:$true] %s370
          %s372 = sshll.u32 [#allocation8], 4
          %s373 = int_to_ptr.vmem [resolvable:$true] %s372
          %378 = dma.hbm_to_vmem [thread:$0]  %s371, 256, %s373, [#allocation9], 64, 64, 4
        $region44: #{tpu_custom_call.1} parent=11 // pred_fallthru
          _
        // Predicated region
        $region45: #{tpu_custom_call.1} parent=11 // pred_check
          %p379 = pneg %p241
        $region46: #{tpu_custom_call.1} parent=11 // pred_check_branch
          %381 = sbr.rel (%p379) target = $region48
        $region47: #{tpu_custom_call.1} parent=11 // pred_region
          _
        $region48: #{tpu_custom_call.1} parent=11 // pred_fallthru
          _
        // Predicated region
        $region49: #{tpu_custom_call.1} parent=11 // pred_check
          %p382 = pneg %p262
        $region50: #{tpu_custom_call.1} parent=11 // pred_check_branch
          %384 = sbr.rel (%p382) target = $region52
        $region51: #{tpu_custom_call.1} parent=11 // pred_region
          _
        $region52: #{tpu_custom_call.1} parent=11 // pred_fallthru
          _
        // Predicated region
        $region53: #{tpu_custom_call.1} parent=11 // pred_check
          %p385 = pneg %p283
        $region54: #{tpu_custom_call.1} parent=11 // pred_check_branch
          %387 = sbr.rel (%p385) target = $region56
        $region55: #{tpu_custom_call.1} parent=11 // pred_region
          _
        $region56: #{tpu_custom_call.1} parent=11 // pred_fallthru
          _
      $region12: #{tpu_custom_call.1} parent=5 // pred_fallthru
        _
      %p388 = scmp.lt.s32.totalorder %s26, 2
      // Predicated region
      $region57: #{tpu_custom_call.1} parent=5 // pred_check
        %p389 = pneg %p388
      $region58: #{tpu_custom_call.1} parent=5 // pred_check_branch
        %391 = sbr.rel (%p389) target = $region60
      $region59: #{tpu_custom_call.1} parent=5 // pred_region
        // Predicated region
        $region61: #{tpu_custom_call.1} parent=59 // pred_check
          %p392 = pneg %p46
        $region62: #{tpu_custom_call.1} parent=59 // pred_check_branch
          %394 = sbr.rel (%p392) target = $region64
        $region63: #{tpu_custom_call.1} parent=59 // pred_region
          %s395 = sand.u32 %s36, 1
          %s396 = scalar_lea.sflag [#allocation3], %s395
          %s397 = sand.u32 %s36, 1
          %s398 = smul.addr %s397, 16
          %s399 = scalar_lea.vmem [#allocation2], %s398
          %s400 = smul.u32 2, %s26
          %402 = vsyncadd %s396, 0
          %s403 = smul.addr %s400, 8
          %s404 = scalar_lea.hbm %s0, %s403
          %s405 = sshll.u32 %s404, 4
          %s406 = int_to_ptr.hbm [resolvable:$true] %s405
          %s407 = sshll.u32 %s399, 4
          %s408 = int_to_ptr.vmem [resolvable:$true] %s407
          %413 = dma.hbm_to_vmem [thread:$0]  %s406, 256, %s408, %s396, 128, 128, 8
        $region64: #{tpu_custom_call.1} parent=59 // pred_fallthru
          _
      $region60: #{tpu_custom_call.1} parent=5 // pred_fallthru
        _
      %p414 = scmp.le.s32.totalorder 1, %s26
      %p415 = scmp.lt.s32.totalorder %s26, 3
      %p416 = pnand %p414, %p415
      %p417 = pneg %p416
      // Predicated region
      $region65: #{tpu_custom_call.1} parent=5 // pred_check
        _
      $region66: #{tpu_custom_call.1} parent=5 // pred_check_branch
        %419 = sbr.rel (%p416) target = $region68
      $region67: #{tpu_custom_call.1} parent=5 // pred_region
        %s420 = ssub.s32 %s26, 1
        %s421 = sand.u32 %s39, 1
        %s422 = scalar_lea.sflag [#allocation3], %s421
        %s423 = sand.u32 %s39, 1
        %s424 = smul.addr %s423, 16
        %s425 = scalar_lea.vmem [#allocation2], %s424
        // Predicated region
        $region69: #{tpu_custom_call.1} parent=67 // pred_check
          %p426 = pneg %p52
        $region70: #{tpu_custom_call.1} parent=67 // pred_check_branch
          %428 = sbr.rel (%p426) target = $region72
        $region71: #{tpu_custom_call.1} parent=67 // pred_region
          %430 = dma.done %s422, 256
        $region72: #{tpu_custom_call.1} parent=67 // pred_fallthru
          _
        // Predicated region
        $region73: #{tpu_custom_call.1} parent=67 // pred_check
          %p431 = pneg %p73
        $region74: #{tpu_custom_call.1} parent=67 // pred_check_branch
          %433 = sbr.rel (%p431) target = $region76
        $region75: #{tpu_custom_call.1} parent=67 // pred_region
          %435 = dma.done [#allocation6], 16
        $region76: #{tpu_custom_call.1} parent=67 // pred_fallthru
          _
        // Predicated region
        $region77: #{tpu_custom_call.1} parent=67 // pred_check
          %p436 = pneg %p136
        $region78: #{tpu_custom_call.1} parent=67 // pred_check_branch
          %438 = sbr.rel (%p436) target = $region80
        $region79: #{tpu_custom_call.1} parent=67 // pred_region
          %440 = dma.done [#allocation6], 256
        $region80: #{tpu_custom_call.1} parent=67 // pred_fallthru
          _
        // Predicated region
        $region81: #{tpu_custom_call.1} parent=67 // pred_check
          %p441 = pneg %p220
        $region82: #{tpu_custom_call.1} parent=67 // pred_check_branch
          %443 = sbr.rel (%p441) target = $region84
        $region83: #{tpu_custom_call.1} parent=67 // pred_region
          %445 = dma.done [#allocation9], 256
        $region84: #{tpu_custom_call.1} parent=67 // pred_fallthru
          _
        %s446 = sand.u32 %s39, 1
        %s447 = scalar_lea.sflag [#allocation3], %s446
        %s448 = sand.u32 %s39, 1
        %s449 = smul.addr %s448, 16
        %s450 = scalar_lea.vmem [#allocation2], %s449
        %p451 = pneg %p52
        %p452 = pneg %p49
        %p453 = pneg %p73
        %p454 = pneg %p70
        %p455 = pneg %p94
        %p456 = pneg %p91
        %p457 = pneg %p115
        %p458 = pneg %p112
        %p459 = pneg %p136
        %p460 = pneg %p133
        %p461 = pneg %p157
        %p462 = pneg %p154
        %p463 = pneg %p178
        %p464 = pneg %p175
        %p465 = pneg %p199
        %p466 = pneg %p196
        %p467 = pneg %p220
        %p468 = pneg %p217
        %p469 = pneg %p241
        %p470 = pneg %p238
        %p471 = pneg %p262
        %p472 = pneg %p259
        %p473 = pneg %p283
        %p474 = pneg %p280
        %p475 = pneg %p309
        %p476 = pneg %p306
        %s477 = sand.u32 %s296, 1
        %s478 = scalar_lea.sflag [#allocation4], %s477
        %s479 = sand.u32 %s296, 1
        %s480 = smul.addr %s479, 16
        %s481 = scalar_lea.vmem [#allocation10], %s480
        %s482 = smul.u32 2, %s31
        %s483 = smul.u32 2, %s31
        %v485 = vld [vmem:[%s425] sm:$0xff]
        %v486 = vld [vmem:[%s425 + $0x8] sm:$0xff]
        %vm487 = vcmask 261120
        %v488 = vsel %vm487, %v485, 0.0
        %489 = vadd.xlane.f32.xlu0 %v488
        %v490 = vpop.xlane.xlu0 %489
        %v491 = vsel %vm487, %v486, 0.0
        %492 = vadd.xlane.f32.xlu0 %v491
        %v493 = vpop.xlane.xlu0 %492
        %v494 = vrcp.pop 32.0
        %v495 = vmul.f32 32.0, %v494
        %v496 = vsub.f32 1.0, %v495
        %v497 = vmul.f32 %v494, %v496
        %v498 = vadd.f32 %v494, %v497
        %vm499 = vweird.f32 %v494
        %v500 = vsel %vm499, %v494, %v498
        %v501 = vmul.f32 %v490, %v500
        %v502 = vmul.f32 %v493, %v500
        %v503 = vsub.f32 %v485, %v501
        %v504 = vsub.f32 %v486, %v502
        %v505 = vmul.f32 %v503, %v503
        %v506 = vmul.f32 %v504, %v504
        %v507 = vsel %vm487, %v505, 0.0
        %508 = vadd.xlane.f32.xlu0 %v507
        %v509 = vpop.xlane.xlu0 %508
        %v510 = vsel %vm487, %v506, 0.0
        %511 = vadd.xlane.f32.xlu0 %v510
        %v512 = vpop.xlane.xlu0 %511
        %v513 = vmul.f32 %v509, %v500
        %v514 = vmul.f32 %v512, %v500
        %v515 = vadd.f32 %v513, 1e-05
        %v516 = vadd.f32 %v514, 1e-05
        %v517 = vrsqrt.pop %v515
        %v518 = vmul.f32 %v517, %v515
        %v519 = vmul.f32 %v518, %v517
        %v520 = vmul.f32 0.5, %v519
        %v521 = vsub.f32 1.5, %v520
        %v522 = vmul.f32 %v517, %v521
        %vm523 = vweird.f32 %v515
        %vm524 = vweird.f32 %v517
        %vm525 = vmor %vm523, %vm524
        %v526 = vsel %vm525, %v517, %v522
        %v527 = vrsqrt.pop %v516
        %v528 = vmul.f32 %v527, %v516
        %v529 = vmul.f32 %v528, %v527
        %v530 = vmul.f32 0.5, %v529
        %v531 = vsub.f32 1.5, %v530
        %v532 = vmul.f32 %v527, %v531
        %vm533 = vweird.f32 %v516
        %vm534 = vweird.f32 %v527
        %vm535 = vmor %vm533, %vm534
        %v536 = vsel %vm535, %v527, %v532
        %v537 = vmul.f32 %v503, %v526
        %v538 = vmul.f32 %v504, %v536
        %v539 = vld [vmem:[#allocation5] sm:$0x1]
        %v541 = vperm.slane %v539, 0
        %v543 = vmul.f32 %v537, %v541
        %v544 = vmul.f32 %v538, %v541
        %v545 = vld [vmem:[%s2] sm:$0x1]
        %v547 = vperm.slane %v545, 0
        %v549 = vadd.f32 %v543, %v547
        %v550 = vadd.f32 %v544, %v547
        %551 = vxpose.xlu0.b32.start [1/16] %v549, 128
        %552 = vxpose.xlu0.b32.cont [2/16] %v550, 128
        %553 = vxpose.xlu0.b32.cont [3/16] 0.0, 128
        %554 = vxpose.xlu0.b32.cont [4/16] 0.0, 128
        %555 = vxpose.xlu0.b32.cont [5/16] 0.0, 128
        %556 = vxpose.xlu0.b32.cont [6/16] 0.0, 128
        %557 = vxpose.xlu0.b32.cont [7/16] 0.0, 128
        %558 = vxpose.xlu0.b32.cont [8/16] 0.0, 128
        %559 = vxpose.xlu0.b32.cont [9/16] 0.0, 128
        %560 = vxpose.xlu0.b32.cont [10/16] 0.0, 128
        %561 = vxpose.xlu0.b32.cont [11/16] 0.0, 128
        %562 = vxpose.xlu0.b32.cont [12/16] 0.0, 128
        %563 = vxpose.xlu0.b32.cont [13/16] 0.0, 128
        %564 = vxpose.xlu0.b32.cont [14/16] 0.0, 128
        %565 = vxpose.xlu0.b32.cont [15/16] 0.0, 128
        %566 = vxpose.xlu0.b32.end [16/16] 0.0, 128
        %v567 = vpop.trf.xlu0
        %v568 = vpop.trf.xlu0
        %v569 = vpop.trf.xlu0
        %v570 = vpop.trf.xlu0
        %v571 = vpop.trf.xlu0
        %v572 = vpop.trf.xlu0
        %v573 = vpop.trf.xlu0
        %v574 = vpop.trf.xlu0
        %v575 = vpop.trf.xlu0
        %v576 = vpop.trf.xlu0
        %v577 = vpop.trf.xlu0
        %v578 = vpop.trf.xlu0
        %v579 = vpop.trf.xlu0
        %v580 = vpop.trf.xlu0
        %v581 = vpop.trf.xlu0
        %v582 = vpop.trf.xlu0
        %v583 = vld [vmem:[%s3] sm:$0xf]
        %v584 = vld [vmem:[%s3 + $0x4] sm:$0xf]
        %v585 = vld [vmem:[%s3 + $0x8] sm:$0xf]
        %v586 = vld [vmem:[%s3 + $0xc] sm:$0xf]
        %v587 = vld [vmem:[%s3 + $0x10] sm:$0xf]
        %v588 = vld [vmem:[%s3 + $0x14] sm:$0xf]
        %v589 = vld [vmem:[%s3 + $0x18] sm:$0xf]
        %v590 = vld [vmem:[%s3 + $0x1c] sm:$0xf]
        %v591 = vld [vmem:[%s3 + $0x20] sm:$0xf]
        %v592 = vld [vmem:[%s3 + $0x24] sm:$0xf]
        %v593 = vld [vmem:[%s3 + $0x28] sm:$0xf]
        %v594 = vld [vmem:[%s3 + $0x2c] sm:$0xf]
        %v595 = vpack.c.bf16 %v568, %v567
        %v596 = vpack.c.bf16 %v570, %v569
        %v609 = vunpack.c.l.b16 %v583
        %v610 = vunpack.c.l.b16 %v584
        %v611 = vunpack.c.l.b16 %v585
        %v612 = vunpack.c.l.b16 %v586
        %v613 = vunpack.c.l.b16 %v587
        %v614 = vunpack.c.l.b16 %v588
        %v615 = vunpack.c.l.b16 %v589
        %v616 = vunpack.c.l.b16 %v590
        %v617 = vunpack.c.l.b16 %v591
        %v618 = vunpack.c.l.b16 %v592
        %v619 = vunpack.c.l.b16 %v593
        %v620 = vunpack.c.l.b16 %v594
        %v621 = vpack.c.b16 %v610, %v609
        %v622 = vpack.c.b16 %v612, %v611
        %v623 = vpack.c.b16 %v614, %v613
        %v624 = vpack.c.b16 %v616, %v615
        %v625 = vpack.c.b16 %v618, %v617
        %v626 = vpack.c.b16 %v620, %v619
        %v628 = vsel %vm487, %v621, 0
        %v631 = vsel %vm487, %v622, 0
        %v634 = vsel %vm487, %v623, 0
        %v637 = vsel %vm487, %v624, 0
        %v640 = vsel %vm487, %v625, 0
        %v643 = vsel %vm487, %v626, 0
        %645 = vmatpush.bf16.msra.mxu0 0
        %646 = vmatpush.bf16.msra.mxu0 0
        %647 = vmatpush.bf16.msra.mxu0 0
        %648 = vmatpush.bf16.msra.mxu0 0
        %649 = vmatpush.bf16.msra.mxu0 0
        %650 = vmatpush.bf16.msra.mxu0 0
        %651 = vmatpush.bf16.msra.mxu0 %v596
        %652 = vmatpush.bf16.msra.mxu0 %v595
        %653 = vmatmul.bf16.gmra.mxu0 %v628
        %v654 = vpop.f32.mrf.mxu0
        %v655 = vadd.f32 0.0, %v654
        %v656 = vpop.f32.mrf.mxu0
        %v657 = vadd.f32 0.0, %v656
        %658 = vmatmul.bf16.gmra.mxu0 %v631
        %v659 = vpop.f32.mrf.mxu0
        %v660 = vadd.f32 0.0, %v659
        %v661 = vpop.f32.mrf.mxu0
        %v662 = vadd.f32 0.0, %v661
        %663 = vmatmul.bf16.gmra.mxu0 %v634
        %v664 = vpop.f32.mrf.mxu0
        %v665 = vadd.f32 0.0, %v664
        %v666 = vpop.f32.mrf.mxu0
        %v667 = vadd.f32 0.0, %v666
        %668 = vmatmul.bf16.gmra.mxu0 %v637
        %v669 = vpop.f32.mrf.mxu0
        %v670 = vadd.f32 0.0, %v669
        %v671 = vpop.f32.mrf.mxu0
        %v672 = vadd.f32 0.0, %v671
        %673 = vmatmul.bf16.gmra.mxu0 %v640
        %v674 = vpop.f32.mrf.mxu0
        %v675 = vadd.f32 0.0, %v674
        %v676 = vpop.f32.mrf.mxu0
        %v677 = vadd.f32 0.0, %v676
        %678 = vmatmul.bf16.gmra.mxu0 %v643
        %v679 = vpop.f32.mrf.mxu0
        %v680 = vadd.f32 0.0, %v679
        %v681 = vpop.f32.mrf.mxu0
        %v682 = vadd.f32 0.0, %v681
        %683 = vdwg.mxu0
        %v684 = vperm.slane %v655, 0
        %v685 = vlaneseq
        %v686 = vshrl.u32 %v685, 7
        %688 = vset.pattern.permute.xlu0 %v686
        %689 = vperm.xlu0 %688, %v684
        %v690 = vpop.permute.xlu0 %689
        %v691 = vlaneseq
        %v692 = vshrl.u32 %v691, 7
        %v693 = vadd.s32 %v692, 8
        %694 = vset.pattern.permute.xlu0 %v693
        %695 = vperm.xlu0 %694, %v684
        %v696 = vpop.permute.xlu0 %695
        %v697 = vperm.slane %v655, 1
        %v698 = vlaneseq
        %v699 = vshrl.u32 %v698, 7
        %701 = vset.pattern.permute.xlu0 %v699
        %702 = vperm.xlu0 %701, %v697
        %v703 = vpop.permute.xlu0 %702
        %v704 = vlaneseq
        %v705 = vshrl.u32 %v704, 7
        %v706 = vadd.s32 %v705, 8
        %707 = vset.pattern.permute.xlu0 %v706
        %708 = vperm.xlu0 %707, %v697
        %v709 = vpop.permute.xlu0 %708
        %v710 = vperm.slane %v655, 2
        %v711 = vlaneseq
        %v712 = vshrl.u32 %v711, 7
        %714 = vset.pattern.permute.xlu0 %v712
        %715 = vperm.xlu0 %714, %v710
        %v716 = vpop.permute.xlu0 %715
        %v717 = vlaneseq
        %v718 = vshrl.u32 %v717, 7
        %v719 = vadd.s32 %v718, 8
        %720 = vset.pattern.permute.xlu0 %v719
        %721 = vperm.xlu0 %720, %v710
        %v722 = vpop.permute.xlu0 %721
        %v723 = vperm.slane %v655, 3
        %v724 = vlaneseq
        %v725 = vshrl.u32 %v724, 7
        %727 = vset.pattern.permute.xlu0 %v725
        %728 = vperm.xlu0 %727, %v723
        %v729 = vpop.permute.xlu0 %728
        %v730 = vlaneseq
        %v731 = vshrl.u32 %v730, 7
        %v732 = vadd.s32 %v731, 8
        %733 = vset.pattern.permute.xlu0 %v732
        %734 = vperm.xlu0 %733, %v723
        %v735 = vpop.permute.xlu0 %734
        %v736 = vperm.slane %v655, 4
        %v737 = vlaneseq
        %v738 = vshrl.u32 %v737, 7
        %740 = vset.pattern.permute.xlu0 %v738
        %741 = vperm.xlu0 %740, %v736
        %v742 = vpop.permute.xlu0 %741
        %v743 = vlaneseq
        %v744 = vshrl.u32 %v743, 7
        %v745 = vadd.s32 %v744, 8
        %746 = vset.pattern.permute.xlu0 %v745
        %747 = vperm.xlu0 %746, %v736
        %v748 = vpop.permute.xlu0 %747
        %v749 = vperm.slane %v655, 5
        %v750 = vlaneseq
        %v751 = vshrl.u32 %v750, 7
        %753 = vset.pattern.permute.xlu0 %v751
        %754 = vperm.xlu0 %753, %v749
        %v755 = vpop.permute.xlu0 %754
        %v756 = vlaneseq
        %v757 = vshrl.u32 %v756, 7
        %v758 = vadd.s32 %v757, 8
        %759 = vset.pattern.permute.xlu0 %v758
        %760 = vperm.xlu0 %759, %v749
        %v761 = vpop.permute.xlu0 %760
        %v762 = vperm.slane %v655, 6
        %v763 = vlaneseq
        %v764 = vshrl.u32 %v763, 7
        %766 = vset.pattern.permute.xlu0 %v764
        %767 = vperm.xlu0 %766, %v762
        %v768 = vpop.permute.xlu0 %767
        %v769 = vlaneseq
        %v770 = vshrl.u32 %v769, 7
        %v771 = vadd.s32 %v770, 8
        %772 = vset.pattern.permute.xlu0 %v771
        %773 = vperm.xlu0 %772, %v762
        %v774 = vpop.permute.xlu0 %773
        %v775 = vperm.slane %v655, 7
        %v776 = vlaneseq
        %v777 = vshrl.u32 %v776, 7
        %779 = vset.pattern.permute.xlu0 %v777
        %780 = vperm.xlu0 %779, %v775
        %v781 = vpop.permute.xlu0 %780
        %v782 = vlaneseq
        %v783 = vshrl.u32 %v782, 7
        %v784 = vadd.s32 %v783, 8
        %785 = vset.pattern.permute.xlu0 %v784
        %786 = vperm.xlu0 %785, %v775
        %v787 = vpop.permute.xlu0 %786
        %v788 = vperm.slane %v657, 0
        %v789 = vlaneseq
        %v790 = vshrl.u32 %v789, 7
        %792 = vset.pattern.permute.xlu0 %v790
        %793 = vperm.xlu0 %792, %v788
        %v794 = vpop.permute.xlu0 %793
        %v795 = vlaneseq
        %v796 = vshrl.u32 %v795, 7
        %v797 = vadd.s32 %v796, 8
        %798 = vset.pattern.permute.xlu0 %v797
        %799 = vperm.xlu0 %798, %v788
        %v800 = vpop.permute.xlu0 %799
        %v801 = vperm.slane %v657, 1
        %v802 = vlaneseq
        %v803 = vshrl.u32 %v802, 7
        %805 = vset.pattern.permute.xlu0 %v803
        %806 = vperm.xlu0 %805, %v801
        %v807 = vpop.permute.xlu0 %806
        %v808 = vlaneseq
        %v809 = vshrl.u32 %v808, 7
        %v810 = vadd.s32 %v809, 8
        %811 = vset.pattern.permute.xlu0 %v810
        %812 = vperm.xlu0 %811, %v801
        %v813 = vpop.permute.xlu0 %812
        %v814 = vperm.slane %v657, 2
        %v815 = vlaneseq
        %v816 = vshrl.u32 %v815, 7
        %818 = vset.pattern.permute.xlu0 %v816
        %819 = vperm.xlu0 %818, %v814
        %v820 = vpop.permute.xlu0 %819
        %v821 = vlaneseq
        %v822 = vshrl.u32 %v821, 7
        %v823 = vadd.s32 %v822, 8
        %824 = vset.pattern.permute.xlu0 %v823
        %825 = vperm.xlu0 %824, %v814
        %v826 = vpop.permute.xlu0 %825
        %v827 = vperm.slane %v657, 3
        %v828 = vlaneseq
        %v829 = vshrl.u32 %v828, 7
        %831 = vset.pattern.permute.xlu0 %v829
        %832 = vperm.xlu0 %831, %v827
        %v833 = vpop.permute.xlu0 %832
        %v834 = vlaneseq
        %v835 = vshrl.u32 %v834, 7
        %v836 = vadd.s32 %v835, 8
        %837 = vset.pattern.permute.xlu0 %v836
        %838 = vperm.xlu0 %837, %v827
        %v839 = vpop.permute.xlu0 %838
        %v840 = vperm.slane %v657, 4
        %v841 = vlaneseq
        %v842 = vshrl.u32 %v841, 7
        %844 = vset.pattern.permute.xlu0 %v842
        %845 = vperm.xlu0 %844, %v840
        %v846 = vpop.permute.xlu0 %845
        %v847 = vlaneseq
        %v848 = vshrl.u32 %v847, 7
        %v849 = vadd.s32 %v848, 8
        %850 = vset.pattern.permute.xlu0 %v849
        %851 = vperm.xlu0 %850, %v840
        %v852 = vpop.permute.xlu0 %851
        %v853 = vperm.slane %v657, 5
        %v854 = vlaneseq
        %v855 = vshrl.u32 %v854, 7
        %857 = vset.pattern.permute.xlu0 %v855
        %858 = vperm.xlu0 %857, %v853
        %v859 = vpop.permute.xlu0 %858
        %v860 = vlaneseq
        %v861 = vshrl.u32 %v860, 7
        %v862 = vadd.s32 %v861, 8
        %863 = vset.pattern.permute.xlu0 %v862
        %864 = vperm.xlu0 %863, %v853
        %v865 = vpop.permute.xlu0 %864
        %v866 = vperm.slane %v657, 6
        %v867 = vlaneseq
        %v868 = vshrl.u32 %v867, 7
        %870 = vset.pattern.permute.xlu0 %v868
        %871 = vperm.xlu0 %870, %v866
        %v872 = vpop.permute.xlu0 %871
        %v873 = vlaneseq
        %v874 = vshrl.u32 %v873, 7
        %v875 = vadd.s32 %v874, 8
        %876 = vset.pattern.permute.xlu0 %v875
        %877 = vperm.xlu0 %876, %v866
        %v878 = vpop.permute.xlu0 %877
        %v879 = vperm.slane %v657, 7
        %v880 = vlaneseq
        %v881 = vshrl.u32 %v880, 7
        %883 = vset.pattern.permute.xlu0 %v881
        %884 = vperm.xlu0 %883, %v879
        %v885 = vpop.permute.xlu0 %884
        %v886 = vlaneseq
        %v887 = vshrl.u32 %v886, 7
        %v888 = vadd.s32 %v887, 8
        %889 = vset.pattern.permute.xlu0 %v888
        %890 = vperm.xlu0 %889, %v879
        %v891 = vpop.permute.xlu0 %890
        %v892 = vperm.slane %v660, 0
        %v893 = vlaneseq
        %v894 = vshrl.u32 %v893, 7
        %896 = vset.pattern.permute.xlu0 %v894
        %897 = vperm.xlu0 %896, %v892
        %v898 = vpop.permute.xlu0 %897
        %v899 = vlaneseq
        %v900 = vshrl.u32 %v899, 7
        %v901 = vadd.s32 %v900, 8
        %902 = vset.pattern.permute.xlu0 %v901
        %903 = vperm.xlu0 %902, %v892
        %v904 = vpop.permute.xlu0 %903
        %v905 = vperm.slane %v660, 1
        %v906 = vlaneseq
        %v907 = vshrl.u32 %v906, 7
        %909 = vset.pattern.permute.xlu0 %v907
        %910 = vperm.xlu0 %909, %v905
        %v911 = vpop.permute.xlu0 %910
        %v912 = vlaneseq
        %v913 = vshrl.u32 %v912, 7
        %v914 = vadd.s32 %v913, 8
        %915 = vset.pattern.permute.xlu0 %v914
        %916 = vperm.xlu0 %915, %v905
        %v917 = vpop.permute.xlu0 %916
        %v918 = vperm.slane %v660, 2
        %v919 = vlaneseq
        %v920 = vshrl.u32 %v919, 7
        %922 = vset.pattern.permute.xlu0 %v920
        %923 = vperm.xlu0 %922, %v918
        %v924 = vpop.permute.xlu0 %923
        %v925 = vlaneseq
        %v926 = vshrl.u32 %v925, 7
        %v927 = vadd.s32 %v926, 8
        %928 = vset.pattern.permute.xlu0 %v927
        %929 = vperm.xlu0 %928, %v918
        %v930 = vpop.permute.xlu0 %929
        %v931 = vperm.slane %v660, 3
        %v932 = vlaneseq
        %v933 = vshrl.u32 %v932, 7
        %935 = vset.pattern.permute.xlu0 %v933
        %936 = vperm.xlu0 %935, %v931
        %v937 = vpop.permute.xlu0 %936
        %v938 = vlaneseq
        %v939 = vshrl.u32 %v938, 7
        %v940 = vadd.s32 %v939, 8
        %941 = vset.pattern.permute.xlu0 %v940
        %942 = vperm.xlu0 %941, %v931
        %v943 = vpop.permute.xlu0 %942
        %v944 = vperm.slane %v660, 4
        %v945 = vlaneseq
        %v946 = vshrl.u32 %v945, 7
        %948 = vset.pattern.permute.xlu0 %v946
        %949 = vperm.xlu0 %948, %v944
        %v950 = vpop.permute.xlu0 %949
        %v951 = vlaneseq
        %v952 = vshrl.u32 %v951, 7
        %v953 = vadd.s32 %v952, 8
        %954 = vset.pattern.permute.xlu0 %v953
        %955 = vperm.xlu0 %954, %v944
        %v956 = vpop.permute.xlu0 %955
        %v957 = vperm.slane %v660, 5
        %v958 = vlaneseq
        %v959 = vshrl.u32 %v958, 7
        %961 = vset.pattern.permute.xlu0 %v959
        %962 = vperm.xlu0 %961, %v957
        %v963 = vpop.permute.xlu0 %962
        %v964 = vlaneseq
        %v965 = vshrl.u32 %v964, 7
        %v966 = vadd.s32 %v965, 8
        %967 = vset.pattern.permute.xlu0 %v966
        %968 = vperm.xlu0 %967, %v957
        %v969 = vpop.permute.xlu0 %968
        %v970 = vperm.slane %v660, 6
        %v971 = vlaneseq
        %v972 = vshrl.u32 %v971, 7
        %974 = vset.pattern.permute.xlu0 %v972
        %975 = vperm.xlu0 %974, %v970
        %v976 = vpop.permute.xlu0 %975
        %v977 = vlaneseq
        %v978 = vshrl.u32 %v977, 7
        %v979 = vadd.s32 %v978, 8
        %980 = vset.pattern.permute.xlu0 %v979
        %981 = vperm.xlu0 %980, %v970
        %v982 = vpop.permute.xlu0 %981
        %v983 = vperm.slane %v660, 7
        %v984 = vlaneseq
        %v985 = vshrl.u32 %v984, 7
        %987 = vset.pattern.permute.xlu0 %v985
        %988 = vperm.xlu0 %987, %v983
        %v989 = vpop.permute.xlu0 %988
        %v990 = vlaneseq
        %v991 = vshrl.u32 %v990, 7
        %v992 = vadd.s32 %v991, 8
        %993 = vset.pattern.permute.xlu0 %v992
        %994 = vperm.xlu0 %993, %v983
        %v995 = vpop.permute.xlu0 %994
        %v996 = vperm.slane %v662, 0
        %v997 = vlaneseq
        %v998 = vshrl.u32 %v997, 7
        %1000 = vset.pattern.permute.xlu0 %v998
        %1001 = vperm.xlu0 %1000, %v996
        %v1002 = vpop.permute.xlu0 %1001
        %v1003 = vlaneseq
        %v1004 = vshrl.u32 %v1003, 7
        %v1005 = vadd.s32 %v1004, 8
        %1006 = vset.pattern.permute.xlu0 %v1005
        %1007 = vperm.xlu0 %1006, %v996
        %v1008 = vpop.permute.xlu0 %1007
        %v1009 = vperm.slane %v662, 1
        %v1010 = vlaneseq
        %v1011 = vshrl.u32 %v1010, 7
        %1013 = vset.pattern.permute.xlu0 %v1011
        %1014 = vperm.xlu0 %1013, %v1009
        %v1015 = vpop.permute.xlu0 %1014
        %v1016 = vlaneseq
        %v1017 = vshrl.u32 %v1016, 7
        %v1018 = vadd.s32 %v1017, 8
        %1019 = vset.pattern.permute.xlu0 %v1018
        %1020 = vperm.xlu0 %1019, %v1009
        %v1021 = vpop.permute.xlu0 %1020
        %v1022 = vperm.slane %v662, 2
        %v1023 = vlaneseq
        %v1024 = vshrl.u32 %v1023, 7
        %1026 = vset.pattern.permute.xlu0 %v1024
        %1027 = vperm.xlu0 %1026, %v1022
        %v1028 = vpop.permute.xlu0 %1027
        %v1029 = vlaneseq
        %v1030 = vshrl.u32 %v1029, 7
        %v1031 = vadd.s32 %v1030, 8
        %1032 = vset.pattern.permute.xlu0 %v1031
        %1033 = vperm.xlu0 %1032, %v1022
        %v1034 = vpop.permute.xlu0 %1033
        %v1035 = vperm.slane %v662, 3
        %v1036 = vlaneseq
        %v1037 = vshrl.u32 %v1036, 7
        %1039 = vset.pattern.permute.xlu0 %v1037
        %1040 = vperm.xlu0 %1039, %v1035
        %v1041 = vpop.permute.xlu0 %1040
        %v1042 = vlaneseq
        %v1043 = vshrl.u32 %v1042, 7
        %v1044 = vadd.s32 %v1043, 8
        %1045 = vset.pattern.permute.xlu0 %v1044
        %1046 = vperm.xlu0 %1045, %v1035
        %v1047 = vpop.permute.xlu0 %1046
        %v1048 = vperm.slane %v662, 4
        %v1049 = vlaneseq
        %v1050 = vshrl.u32 %v1049, 7
        %1052 = vset.pattern.permute.xlu0 %v1050
        %1053 = vperm.xlu0 %1052, %v1048
        %v1054 = vpop.permute.xlu0 %1053
        %v1055 = vlaneseq
        %v1056 = vshrl.u32 %v1055, 7
        %v1057 = vadd.s32 %v1056, 8
        %1058 = vset.pattern.permute.xlu0 %v1057
        %1059 = vperm.xlu0 %1058, %v1048
        %v1060 = vpop.permute.xlu0 %1059
        %v1061 = vperm.slane %v662, 5
        %v1062 = vlaneseq
        %v1063 = vshrl.u32 %v1062, 7
        %1065 = vset.pattern.permute.xlu0 %v1063
        %1066 = vperm.xlu0 %1065, %v1061
        %v1067 = vpop.permute.xlu0 %1066
        %v1068 = vlaneseq
        %v1069 = vshrl.u32 %v1068, 7
        %v1070 = vadd.s32 %v1069, 8
        %1071 = vset.pattern.permute.xlu0 %v1070
        %1072 = vperm.xlu0 %1071, %v1061
        %v1073 = vpop.permute.xlu0 %1072
        %v1074 = vperm.slane %v662, 6
        %v1075 = vlaneseq
        %v1076 = vshrl.u32 %v1075, 7
        %1078 = vset.pattern.permute.xlu0 %v1076
        %1079 = vperm.xlu0 %1078, %v1074
        %v1080 = vpop.permute.xlu0 %1079
        %v1081 = vlaneseq
        %v1082 = vshrl.u32 %v1081, 7
        %v1083 = vadd.s32 %v1082, 8
        %1084 = vset.pattern.permute.xlu0 %v1083
        %1085 = vperm.xlu0 %1084, %v1074
        %v1086 = vpop.permute.xlu0 %1085
        %v1087 = vperm.slane %v662, 7
        %v1088 = vlaneseq
        %v1089 = vshrl.u32 %v1088, 7
        %1091 = vset.pattern.permute.xlu0 %v1089
        %1092 = vperm.xlu0 %1091, %v1087
        %v1093 = vpop.permute.xlu0 %1092
        %v1094 = vlaneseq
        %v1095 = vshrl.u32 %v1094, 7
        %v1096 = vadd.s32 %v1095, 8
        %1097 = vset.pattern.permute.xlu0 %v1096
        %1098 = vperm.xlu0 %1097, %v1087
        %v1099 = vpop.permute.xlu0 %1098
        %v1104 = vrot.slane %v665, 1
        %v1105 = vrot.slane %v665, 2
        %v1106 = vrot.slane %v665, 3
        %v1107 = vrot.slane %v665, 4
        %v1108 = vrot.slane %v665, 5
        %v1109 = vrot.slane %v665, 6
        %v1110 = vrot.slane %v665, 7
        %v1111 = vrot.slane %v667, 1
        %v1112 = vrot.slane %v667, 2
        %v1113 = vrot.slane %v667, 3
        %v1114 = vrot.slane %v667, 4
        %v1115 = vrot.slane %v667, 5
        %v1116 = vrot.slane %v667, 6
        %v1117 = vrot.slane %v667, 7
        %v1118 = vrot.slane %v670, 1
        %v1119 = vrot.slane %v670, 2
        %v1120 = vrot.slane %v670, 3
        %v1121 = vrot.slane %v670, 4
        %v1122 = vrot.slane %v670, 5
        %v1123 = vrot.slane %v670, 6
        %v1124 = vrot.slane %v670, 7
        %v1125 = vrot.slane %v672, 1
        %v1126 = vrot.slane %v672, 2
        %v1127 = vrot.slane %v672, 3
        %v1128 = vrot.slane %v672, 4
        %v1129 = vrot.slane %v672, 5
        %v1130 = vrot.slane %v672, 6
        %v1131 = vrot.slane %v672, 7
        %v1132 = vperm.slane %v665, 0
        %v1133 = vperm.slane %v1104, 0
        %v1134 = vperm.slane %v1105, 0
        %v1135 = vperm.slane %v1106, 0
        %v1136 = vperm.slane %v1107, 0
        %v1137 = vperm.slane %v1108, 0
        %v1138 = vperm.slane %v1109, 0
        %v1139 = vperm.slane %v1110, 0
        %v1140 = vperm.slane %v667, 0
        %v1141 = vperm.slane %v1111, 0
        %v1142 = vperm.slane %v1112, 0
        %v1143 = vperm.slane %v1113, 0
        %v1144 = vperm.slane %v1114, 0
        %v1145 = vperm.slane %v1115, 0
        %v1146 = vperm.slane %v1116, 0
        %v1147 = vperm.slane %v1117, 0
        %v1148 = vperm.slane %v670, 0
        %v1149 = vperm.slane %v1118, 0
        %v1150 = vperm.slane %v1119, 0
        %v1151 = vperm.slane %v1120, 0
        %v1152 = vperm.slane %v1121, 0
        %v1153 = vperm.slane %v1122, 0
        %v1154 = vperm.slane %v1123, 0
        %v1155 = vperm.slane %v1124, 0
        %v1156 = vperm.slane %v672, 0
        %v1157 = vperm.slane %v1125, 0
        %v1158 = vperm.slane %v1126, 0
        %v1159 = vperm.slane %v1127, 0
        %v1160 = vperm.slane %v1128, 0
        %v1161 = vperm.slane %v1129, 0
        %v1162 = vperm.slane %v1130, 0
        %v1163 = vperm.slane %v1131, 0
        %v1196 = vmul.f32 %v690, %v1132
        %v1197 = vmul.f32 %v696, %v1132
        %v1198 = vmul.f32 %v703, %v1133
        %v1199 = vmul.f32 %v709, %v1133
        %v1200 = vmul.f32 %v716, %v1134
        %v1201 = vmul.f32 %v722, %v1134
        %v1202 = vmul.f32 %v729, %v1135
        %v1203 = vmul.f32 %v735, %v1135
        %v1204 = vmul.f32 %v742, %v1136
        %v1205 = vmul.f32 %v748, %v1136
        %v1206 = vmul.f32 %v755, %v1137
        %v1207 = vmul.f32 %v761, %v1137
        %v1208 = vmul.f32 %v768, %v1138
        %v1209 = vmul.f32 %v774, %v1138
        %v1210 = vmul.f32 %v781, %v1139
        %v1211 = vmul.f32 %v787, %v1139
        %v1212 = vmul.f32 %v794, %v1140
        %v1213 = vmul.f32 %v800, %v1140
        %v1214 = vmul.f32 %v807, %v1141
        %v1215 = vmul.f32 %v813, %v1141
        %v1216 = vmul.f32 %v820, %v1142
        %v1217 = vmul.f32 %v826, %v1142
        %v1218 = vmul.f32 %v833, %v1143
        %v1219 = vmul.f32 %v839, %v1143
        %v1220 = vmul.f32 %v846, %v1144
        %v1221 = vmul.f32 %v852, %v1144
        %v1222 = vmul.f32 %v859, %v1145
        %v1223 = vmul.f32 %v865, %v1145
        %v1224 = vmul.f32 %v872, %v1146
        %v1225 = vmul.f32 %v878, %v1146
        %v1226 = vmul.f32 %v885, %v1147
        %v1227 = vmul.f32 %v891, %v1147
        %v1228 = vmul.f32 %v898, %v1148
        %v1229 = vmul.f32 %v904, %v1148
        %v1230 = vmul.f32 %v911, %v1149
        %v1231 = vmul.f32 %v917, %v1149
        %v1232 = vmul.f32 %v924, %v1150
        %v1233 = vmul.f32 %v930, %v1150
        %v1234 = vmul.f32 %v937, %v1151
        %v1235 = vmul.f32 %v943, %v1151
        %v1236 = vmul.f32 %v950, %v1152
        %v1237 = vmul.f32 %v956, %v1152
        %v1238 = vmul.f32 %v963, %v1153
        %v1239 = vmul.f32 %v969, %v1153
        %v1240 = vmul.f32 %v976, %v1154
        %v1241 = vmul.f32 %v982, %v1154
        %v1242 = vmul.f32 %v989, %v1155
        %v1243 = vmul.f32 %v995, %v1155
        %v1244 = vmul.f32 %v1002, %v1156
        %v1245 = vmul.f32 %v1008, %v1156
        %v1246 = vmul.f32 %v1015, %v1157
        %v1247 = vmul.f32 %v1021, %v1157
        %v1248 = vmul.f32 %v1028, %v1158
        %v1249 = vmul.f32 %v1034, %v1158
        %v1250 = vmul.f32 %v1041, %v1159
        %v1251 = vmul.f32 %v1047, %v1159
        %v1252 = vmul.f32 %v1054, %v1160
        %v1253 = vmul.f32 %v1060, %v1160
        %v1254 = vmul.f32 %v1067, %v1161
        %v1255 = vmul.f32 %v1073, %v1161
        %v1256 = vmul.f32 %v1080, %v1162
        %v1257 = vmul.f32 %v1086, %v1162
        %v1258 = vmul.f32 %v1093, %v1163
        %v1259 = vmul.f32 %v1099, %v1163
        %vm1260 = vcmask 130048
        %v1261 = vsel %vm1260, %v1196, 0.0
        %v1262 = vsel %vm1260, %v1198, 0.0
        %v1263 = vadd.f32 %v1261, %v1262
        %v1264 = vsel %vm1260, %v1200, 0.0
        %v1265 = vadd.f32 %v1263, %v1264
        %v1266 = vsel %vm1260, %v1202, 0.0
        %v1267 = vadd.f32 %v1265, %v1266
        %v1268 = vsel %vm1260, %v1204, 0.0
        %v1269 = vadd.f32 %v1267, %v1268
        %v1270 = vsel %vm1260, %v1206, 0.0
        %v1271 = vadd.f32 %v1269, %v1270
        %v1272 = vsel %vm1260, %v1208, 0.0
        %v1273 = vadd.f32 %v1271, %v1272
        %v1274 = vsel %vm1260, %v1210, 0.0
        %v1275 = vadd.f32 %v1273, %v1274
        %v1276 = vsel %vm1260, %v1197, 0.0
        %v1277 = vsel %vm1260, %v1199, 0.0
        %v1278 = vadd.f32 %v1276, %v1277
        %v1279 = vsel %vm1260, %v1201, 0.0
        %v1280 = vadd.f32 %v1278, %v1279
        %v1281 = vsel %vm1260, %v1203, 0.0
        %v1282 = vadd.f32 %v1280, %v1281
        %v1283 = vsel %vm1260, %v1205, 0.0
        %v1284 = vadd.f32 %v1282, %v1283
        %v1285 = vsel %vm1260, %v1207, 0.0
        %v1286 = vadd.f32 %v1284, %v1285
        %v1287 = vsel %vm1260, %v1209, 0.0
        %v1288 = vadd.f32 %v1286, %v1287
        %v1289 = vsel %vm1260, %v1211, 0.0
        %v1290 = vadd.f32 %v1288, %v1289
        %v1291 = vsel %vm1260, %v1212, 0.0
        %v1292 = vsel %vm1260, %v1214, 0.0
        %v1293 = vadd.f32 %v1291, %v1292
        %v1294 = vsel %vm1260, %v1216, 0.0
        %v1295 = vadd.f32 %v1293, %v1294
        %v1296 = vsel %vm1260, %v1218, 0.0
        %v1297 = vadd.f32 %v1295, %v1296
        %v1298 = vsel %vm1260, %v1220, 0.0
        %v1299 = vadd.f32 %v1297, %v1298
        %v1300 = vsel %vm1260, %v1222, 0.0
        %v1301 = vadd.f32 %v1299, %v1300
        %v1302 = vsel %vm1260, %v1224, 0.0
        %v1303 = vadd.f32 %v1301, %v1302
        %v1304 = vsel %vm1260, %v1226, 0.0
        %v1305 = vadd.f32 %v1303, %v1304
        %v1306 = vsel %vm1260, %v1213, 0.0
        %v1307 = vsel %vm1260, %v1215, 0.0
        %v1308 = vadd.f32 %v1306, %v1307
        %v1309 = vsel %vm1260, %v1217, 0.0
        %v1310 = vadd.f32 %v1308, %v1309
        %v1311 = vsel %vm1260, %v1219, 0.0
        %v1312 = vadd.f32 %v1310, %v1311
        %v1313 = vsel %vm1260, %v1221, 0.0
        %v1314 = vadd.f32 %v1312, %v1313
        %v1315 = vsel %vm1260, %v1223, 0.0
        %v1316 = vadd.f32 %v1314, %v1315
        %v1317 = vsel %vm1260, %v1225, 0.0
        %v1318 = vadd.f32 %v1316, %v1317
        %v1319 = vsel %vm1260, %v1227, 0.0
        %v1320 = vadd.f32 %v1318, %v1319
        %v1321 = vsel %vm1260, %v1228, 0.0
        %v1322 = vsel %vm1260, %v1230, 0.0
        %v1323 = vadd.f32 %v1321, %v1322
        %v1324 = vsel %vm1260, %v1232, 0.0
        %v1325 = vadd.f32 %v1323, %v1324
        %v1326 = vsel %vm1260, %v1234, 0.0
        %v1327 = vadd.f32 %v1325, %v1326
        %v1328 = vsel %vm1260, %v1236, 0.0
        %v1329 = vadd.f32 %v1327, %v1328
        %v1330 = vsel %vm1260, %v1238, 0.0
        %v1331 = vadd.f32 %v1329, %v1330
        %v1332 = vsel %vm1260, %v1240, 0.0
        %v1333 = vadd.f32 %v1331, %v1332
        %v1334 = vsel %vm1260, %v1242, 0.0
        %v1335 = vadd.f32 %v1333, %v1334
        %v1336 = vsel %vm1260, %v1229, 0.0
        %v1337 = vsel %vm1260, %v1231, 0.0
        %v1338 = vadd.f32 %v1336, %v1337
        %v1339 = vsel %vm1260, %v1233, 0.0
        %v1340 = vadd.f32 %v1338, %v1339
        %v1341 = vsel %vm1260, %v1235, 0.0
        %v1342 = vadd.f32 %v1340, %v1341
        %v1343 = vsel %vm1260, %v1237, 0.0
        %v1344 = vadd.f32 %v1342, %v1343
        %v1345 = vsel %vm1260, %v1239, 0.0
        %v1346 = vadd.f32 %v1344, %v1345
        %v1347 = vsel %vm1260, %v1241, 0.0
        %v1348 = vadd.f32 %v1346, %v1347
        %v1349 = vsel %vm1260, %v1243, 0.0
        %v1350 = vadd.f32 %v1348, %v1349
        %v1351 = vsel %vm1260, %v1244, 0.0
        %v1352 = vsel %vm1260, %v1246, 0.0
        %v1353 = vadd.f32 %v1351, %v1352
        %v1354 = vsel %vm1260, %v1248, 0.0
        %v1355 = vadd.f32 %v1353, %v1354
        %v1356 = vsel %vm1260, %v1250, 0.0
        %v1357 = vadd.f32 %v1355, %v1356
        %v1358 = vsel %vm1260, %v1252, 0.0
        %v1359 = vadd.f32 %v1357, %v1358
        %v1360 = vsel %vm1260, %v1254, 0.0
        %v1361 = vadd.f32 %v1359, %v1360
        %v1362 = vsel %vm1260, %v1256, 0.0
        %v1363 = vadd.f32 %v1361, %v1362
        %v1364 = vsel %vm1260, %v1258, 0.0
        %v1365 = vadd.f32 %v1363, %v1364
        %v1366 = vsel %vm1260, %v1245, 0.0
        %v1367 = vsel %vm1260, %v1247, 0.0
        %v1368 = vadd.f32 %v1366, %v1367
        %v1369 = vsel %vm1260, %v1249, 0.0
        %v1370 = vadd.f32 %v1368, %v1369
        %v1371 = vsel %vm1260, %v1251, 0.0
        %v1372 = vadd.f32 %v1370, %v1371
        %v1373 = vsel %vm1260, %v1253, 0.0
        %v1374 = vadd.f32 %v1372, %v1373
        %v1375 = vsel %vm1260, %v1255, 0.0
        %v1376 = vadd.f32 %v1374, %v1375
        %v1377 = vsel %vm1260, %v1257, 0.0
        %v1378 = vadd.f32 %v1376, %v1377
        %v1379 = vsel %vm1260, %v1259, 0.0
        %v1380 = vadd.f32 %v1378, %v1379
        %v1381 = vld [vmem:[%s5] sm:$0xff]
        %v1382 = vld [vmem:[%s5 + $0x8] sm:$0xff]
        %v1383 = vld [vmem:[%s5 + $0x10] sm:$0xff]
        %v1384 = vld [vmem:[%s5 + $0x18] sm:$0xff]
        %v1385 = vld [vmem:[%s5 + $0x20] sm:$0xff]
        %v1386 = vld [vmem:[%s5 + $0x28] sm:$0xff]
        %v1387 = vld [vmem:[%s5 + $0x30] sm:$0xff]
        %v1388 = vld [vmem:[%s5 + $0x38] sm:$0xff]
        %v1389 = vld [vmem:[%s5 + $0x40] sm:$0xff]
        %v1390 = vld [vmem:[%s5 + $0x48] sm:$0xff]
        %v1391 = vld [vmem:[%s5 + $0x50] sm:$0xff]
        %v1392 = vld [vmem:[%s5 + $0x58] sm:$0xff]
        %v1393 = vld [vmem:[%s5 + $0x60] sm:$0xff]
        %v1394 = vld [vmem:[%s5 + $0x68] sm:$0xff]
        %v1395 = vld [vmem:[%s5 + $0x70] sm:$0xff]
        %v1396 = vld [vmem:[%s5 + $0x78] sm:$0xff]
        %v1397 = vmul.f32 %v690, %v1381
        %v1398 = vmul.f32 %v696, %v1382
        %v1399 = vmul.f32 %v703, %v1383
        %v1400 = vmul.f32 %v709, %v1384
        %v1401 = vmul.f32 %v716, %v1385
        %v1402 = vmul.f32 %v722, %v1386
        %v1403 = vmul.f32 %v729, %v1387
        %v1404 = vmul.f32 %v735, %v1388
        %v1405 = vmul.f32 %v742, %v1389
        %v1406 = vmul.f32 %v748, %v1390
        %v1407 = vmul.f32 %v755, %v1391
        %v1408 = vmul.f32 %v761, %v1392
        %v1409 = vmul.f32 %v768, %v1393
        %v1410 = vmul.f32 %v774, %v1394
        %v1411 = vmul.f32 %v781, %v1395
        %v1412 = vmul.f32 %v787, %v1396
        %v1413 = vmul.f32 %v794, %v1381
        %v1414 = vmul.f32 %v800, %v1382
        %v1415 = vmul.f32 %v807, %v1383
        %v1416 = vmul.f32 %v813, %v1384
        %v1417 = vmul.f32 %v820, %v1385
        %v1418 = vmul.f32 %v826, %v1386
        %v1419 = vmul.f32 %v833, %v1387
        %v1420 = vmul.f32 %v839, %v1388
        %v1421 = vmul.f32 %v846, %v1389
        %v1422 = vmul.f32 %v852, %v1390
        %v1423 = vmul.f32 %v859, %v1391
        %v1424 = vmul.f32 %v865, %v1392
        %v1425 = vmul.f32 %v872, %v1393
        %v1426 = vmul.f32 %v878, %v1394
        %v1427 = vmul.f32 %v885, %v1395
        %v1428 = vmul.f32 %v891, %v1396
        %v1429 = vmul.f32 %v898, %v1381
        %v1430 = vmul.f32 %v904, %v1382
        %v1431 = vmul.f32 %v911, %v1383
        %v1432 = vmul.f32 %v917, %v1384
        %v1433 = vmul.f32 %v924, %v1385
        %v1434 = vmul.f32 %v930, %v1386
        %v1435 = vmul.f32 %v937, %v1387
        %v1436 = vmul.f32 %v943, %v1388
        %v1437 = vmul.f32 %v950, %v1389
        %v1438 = vmul.f32 %v956, %v1390
        %v1439 = vmul.f32 %v963, %v1391
        %v1440 = vmul.f32 %v969, %v1392
        %v1441 = vmul.f32 %v976, %v1393
        %v1442 = vmul.f32 %v982, %v1394
        %v1443 = vmul.f32 %v989, %v1395
        %v1444 = vmul.f32 %v995, %v1396
        %v1445 = vmul.f32 %v1002, %v1381
        %v1446 = vmul.f32 %v1008, %v1382
        %v1447 = vmul.f32 %v1015, %v1383
        %v1448 = vmul.f32 %v1021, %v1384
        %v1449 = vmul.f32 %v1028, %v1385
        %v1450 = vmul.f32 %v1034, %v1386
        %v1451 = vmul.f32 %v1041, %v1387
        %v1452 = vmul.f32 %v1047, %v1388
        %v1453 = vmul.f32 %v1054, %v1389
        %v1454 = vmul.f32 %v1060, %v1390
        %v1455 = vmul.f32 %v1067, %v1391
        %v1456 = vmul.f32 %v1073, %v1392
        %v1457 = vmul.f32 %v1080, %v1393
        %v1458 = vmul.f32 %v1086, %v1394
        %v1459 = vmul.f32 %v1093, %v1395
        %v1460 = vmul.f32 %v1099, %v1396
        %v1461 = vsel %vm1260, %v1397, 0.0
        %v1462 = vsel %vm1260, %v1399, 0.0
        %v1463 = vadd.f32 %v1461, %v1462
        %v1464 = vsel %vm1260, %v1401, 0.0
        %v1465 = vadd.f32 %v1463, %v1464
        %v1466 = vsel %vm1260, %v1403, 0.0
        %v1467 = vadd.f32 %v1465, %v1466
        %v1468 = vsel %vm1260, %v1405, 0.0
        %v1469 = vadd.f32 %v1467, %v1468
        %v1470 = vsel %vm1260, %v1407, 0.0
        %v1471 = vadd.f32 %v1469, %v1470
        %v1472 = vsel %vm1260, %v1409, 0.0
        %v1473 = vadd.f32 %v1471, %v1472
        %v1474 = vsel %vm1260, %v1411, 0.0
        %v1475 = vadd.f32 %v1473, %v1474
        %v1476 = vsel %vm1260, %v1398, 0.0
        %v1477 = vsel %vm1260, %v1400, 0.0
        %v1478 = vadd.f32 %v1476, %v1477
        %v1479 = vsel %vm1260, %v1402, 0.0
        %v1480 = vadd.f32 %v1478, %v1479
        %v1481 = vsel %vm1260, %v1404, 0.0
        %v1482 = vadd.f32 %v1480, %v1481
        %v1483 = vsel %vm1260, %v1406, 0.0
        %v1484 = vadd.f32 %v1482, %v1483
        %v1485 = vsel %vm1260, %v1408, 0.0
        %v1486 = vadd.f32 %v1484, %v1485
        %v1487 = vsel %vm1260, %v1410, 0.0
        %v1488 = vadd.f32 %v1486, %v1487
        %v1489 = vsel %vm1260, %v1412, 0.0
        %v1490 = vadd.f32 %v1488, %v1489
        %v1491 = vsel %vm1260, %v1413, 0.0
        %v1492 = vsel %vm1260, %v1415, 0.0
        %v1493 = vadd.f32 %v1491, %v1492
        %v1494 = vsel %vm1260, %v1417, 0.0
        %v1495 = vadd.f32 %v1493, %v1494
        %v1496 = vsel %vm1260, %v1419, 0.0
        %v1497 = vadd.f32 %v1495, %v1496
        %v1498 = vsel %vm1260, %v1421, 0.0
        %v1499 = vadd.f32 %v1497, %v1498
        %v1500 = vsel %vm1260, %v1423, 0.0
        %v1501 = vadd.f32 %v1499, %v1500
        %v1502 = vsel %vm1260, %v1425, 0.0
        %v1503 = vadd.f32 %v1501, %v1502
        %v1504 = vsel %vm1260, %v1427, 0.0
        %v1505 = vadd.f32 %v1503, %v1504
        %v1506 = vsel %vm1260, %v1414, 0.0
        %v1507 = vsel %vm1260, %v1416, 0.0
        %v1508 = vadd.f32 %v1506, %v1507
        %v1509 = vsel %vm1260, %v1418, 0.0
        %v1510 = vadd.f32 %v1508, %v1509
        %v1511 = vsel %vm1260, %v1420, 0.0
        %v1512 = vadd.f32 %v1510, %v1511
        %v1513 = vsel %vm1260, %v1422, 0.0
        %v1514 = vadd.f32 %v1512, %v1513
        %v1515 = vsel %vm1260, %v1424, 0.0
        %v1516 = vadd.f32 %v1514, %v1515
        %v1517 = vsel %vm1260, %v1426, 0.0
        %v1518 = vadd.f32 %v1516, %v1517
        %v1519 = vsel %vm1260, %v1428, 0.0
        %v1520 = vadd.f32 %v1518, %v1519
        %v1521 = vsel %vm1260, %v1429, 0.0
        %v1522 = vsel %vm1260, %v1431, 0.0
        %v1523 = vadd.f32 %v1521, %v1522
        %v1524 = vsel %vm1260, %v1433, 0.0
        %v1525 = vadd.f32 %v1523, %v1524
        %v1526 = vsel %vm1260, %v1435, 0.0
        %v1527 = vadd.f32 %v1525, %v1526
        %v1528 = vsel %vm1260, %v1437, 0.0
        %v1529 = vadd.f32 %v1527, %v1528
        %v1530 = vsel %vm1260, %v1439, 0.0
        %v1531 = vadd.f32 %v1529, %v1530
        %v1532 = vsel %vm1260, %v1441, 0.0
        %v1533 = vadd.f32 %v1531, %v1532
        %v1534 = vsel %vm1260, %v1443, 0.0
        %v1535 = vadd.f32 %v1533, %v1534
        %v1536 = vsel %vm1260, %v1430, 0.0
        %v1537 = vsel %vm1260, %v1432, 0.0
        %v1538 = vadd.f32 %v1536, %v1537
        %v1539 = vsel %vm1260, %v1434, 0.0
        %v1540 = vadd.f32 %v1538, %v1539
        %v1541 = vsel %vm1260, %v1436, 0.0
        %v1542 = vadd.f32 %v1540, %v1541
        %v1543 = vsel %vm1260, %v1438, 0.0
        %v1544 = vadd.f32 %v1542, %v1543
        %v1545 = vsel %vm1260, %v1440, 0.0
        %v1546 = vadd.f32 %v1544, %v1545
        %v1547 = vsel %vm1260, %v1442, 0.0
        %v1548 = vadd.f32 %v1546, %v1547
        %v1549 = vsel %vm1260, %v1444, 0.0
        %v1550 = vadd.f32 %v1548, %v1549
        %v1551 = vsel %vm1260, %v1445, 0.0
        %v1552 = vsel %vm1260, %v1447, 0.0
        %v1553 = vadd.f32 %v1551, %v1552
        %v1554 = vsel %vm1260, %v1449, 0.0
        %v1555 = vadd.f32 %v1553, %v1554
        %v1556 = vsel %vm1260, %v1451, 0.0
        %v1557 = vadd.f32 %v1555, %v1556
        %v1558 = vsel %vm1260, %v1453, 0.0
        %v1559 = vadd.f32 %v1557, %v1558
        %v1560 = vsel %vm1260, %v1455, 0.0
        %v1561 = vadd.f32 %v1559, %v1560
        %v1562 = vsel %vm1260, %v1457, 0.0
        %v1563 = vadd.f32 %v1561, %v1562
        %v1564 = vsel %vm1260, %v1459, 0.0
        %v1565 = vadd.f32 %v1563, %v1564
        %v1566 = vsel %vm1260, %v1446, 0.0
        %v1567 = vsel %vm1260, %v1448, 0.0
        %v1568 = vadd.f32 %v1566, %v1567
        %v1569 = vsel %vm1260, %v1450, 0.0
        %v1570 = vadd.f32 %v1568, %v1569
        %v1571 = vsel %vm1260, %v1452, 0.0
        %v1572 = vadd.f32 %v1570, %v1571
        %v1573 = vsel %vm1260, %v1454, 0.0
        %v1574 = vadd.f32 %v1572, %v1573
        %v1575 = vsel %vm1260, %v1456, 0.0
        %v1576 = vadd.f32 %v1574, %v1575
        %v1577 = vsel %vm1260, %v1458, 0.0
        %v1578 = vadd.f32 %v1576, %v1577
        %v1579 = vsel %vm1260, %v1460, 0.0
        %v1580 = vadd.f32 %v1578, %v1579
        %v1581 = vadd.f32 %v1275, %v1475
        %v1582 = vadd.f32 %v1290, %v1490
        %v1583 = vadd.f32 %v1305, %v1505
        %v1584 = vadd.f32 %v1320, %v1520
        %v1585 = vadd.f32 %v1335, %v1535
        %v1586 = vadd.f32 %v1350, %v1550
        %v1587 = vadd.f32 %v1365, %v1565
        %v1588 = vadd.f32 %v1380, %v1580
        %v1589 = vmul.f32 %v1581, 0.17677669
        %v1590 = vmul.f32 %v1582, 0.17677669
        %v1591 = vmul.f32 %v1583, 0.17677669
        %v1592 = vmul.f32 %v1584, 0.17677669
        %v1593 = vmul.f32 %v1585, 0.17677669
        %v1594 = vmul.f32 %v1586, 0.17677669
        %v1595 = vmul.f32 %v1587, 0.17677669
        %v1596 = vmul.f32 %v1588, 0.17677669
        %v1597 = vsel %vm1260, %v1589, -inf
        %1598 = vmax.xlane.f32.xlu0 %v1597
        %v1599 = vpop.xlane.xlu0 %1598
        %v1600 = vsel %vm1260, %v1590, -inf
        %1601 = vmax.xlane.f32.xlu0 %v1600
        %v1602 = vpop.xlane.xlu0 %1601
        %v1603 = vsel %vm1260, %v1591, -inf
        %1604 = vmax.xlane.f32.xlu0 %v1603
        %v1605 = vpop.xlane.xlu0 %1604
        %v1606 = vsel %vm1260, %v1592, -inf
        %1607 = vmax.xlane.f32.xlu0 %v1606
        %v1608 = vpop.xlane.xlu0 %1607
        %v1609 = vsel %vm1260, %v1593, -inf
        %1610 = vmax.xlane.f32.xlu0 %v1609
        %v1611 = vpop.xlane.xlu0 %1610
        %v1612 = vsel %vm1260, %v1594, -inf
        %1613 = vmax.xlane.f32.xlu0 %v1612
        %v1614 = vpop.xlane.xlu0 %1613
        %v1615 = vsel %vm1260, %v1595, -inf
        %1616 = vmax.xlane.f32.xlu0 %v1615
        %v1617 = vpop.xlane.xlu0 %1616
        %v1618 = vsel %vm1260, %v1596, -inf
        %1619 = vmax.xlane.f32.xlu0 %v1618
        %v1620 = vpop.xlane.xlu0 %1619
        %v1621 = vsub.f32 %v1589, %v1599
        %v1622 = vsub.f32 %v1590, %v1602
        %v1623 = vsub.f32 %v1591, %v1605
        %v1624 = vsub.f32 %v1592, %v1608
        %v1625 = vsub.f32 %v1593, %v1611
        %v1626 = vsub.f32 %v1594, %v1614
        %v1627 = vsub.f32 %v1595, %v1617
        %v1628 = vsub.f32 %v1596, %v1620
        %v1629 = vmul.f32 %v1621, 1.442695
        %v1630 = vpow.pop %v1629
        %v1631 = vmul.f32 %v1622, 1.442695
        %v1632 = vpow.pop %v1631
        %v1633 = vmul.f32 %v1623, 1.442695
        %v1634 = vpow.pop %v1633
        %v1635 = vmul.f32 %v1624, 1.442695
        %v1636 = vpow.pop %v1635
        %v1637 = vmul.f32 %v1625, 1.442695
        %v1638 = vpow.pop %v1637
        %v1639 = vmul.f32 %v1626, 1.442695
        %v1640 = vpow.pop %v1639
        %v1641 = vmul.f32 %v1627, 1.442695
        %v1642 = vpow.pop %v1641
        %v1643 = vmul.f32 %v1628, 1.442695
        %v1644 = vpow.pop %v1643
        %v1645 = vsel %vm1260, %v1630, 0.0
        %1646 = vadd.xlane.f32.xlu0 %v1645
        %v1647 = vpop.xlane.xlu0 %1646
        %v1648 = vsel %vm1260, %v1632, 0.0
        %1649 = vadd.xlane.f32.xlu0 %v1648
        %v1650 = vpop.xlane.xlu0 %1649
        %v1651 = vsel %vm1260, %v1634, 0.0
        %1652 = vadd.xlane.f32.xlu0 %v1651
        %v1653 = vpop.xlane.xlu0 %1652
        %v1654 = vsel %vm1260, %v1636, 0.0
        %1655 = vadd.xlane.f32.xlu0 %v1654
        %v1656 = vpop.xlane.xlu0 %1655
        %v1657 = vsel %vm1260, %v1638, 0.0
        %1658 = vadd.xlane.f32.xlu0 %v1657
        %v1659 = vpop.xlane.xlu0 %1658
        %v1660 = vsel %vm1260, %v1640, 0.0
        %1661 = vadd.xlane.f32.xlu0 %v1660
        %v1662 = vpop.xlane.xlu0 %1661
        %v1663 = vsel %vm1260, %v1642, 0.0
        %1664 = vadd.xlane.f32.xlu0 %v1663
        %v1665 = vpop.xlane.xlu0 %1664
        %v1666 = vsel %vm1260, %v1644, 0.0
        %1667 = vadd.xlane.f32.xlu0 %v1666
        %v1668 = vpop.xlane.xlu0 %1667
        %v1669 = vrcp.pop %v1647
        %v1670 = vrcp.pop %v1650
        %v1671 = vrcp.pop %v1653
        %v1672 = vrcp.pop %v1656
        %v1673 = vrcp.pop %v1659
        %v1674 = vrcp.pop %v1662
        %v1675 = vrcp.pop %v1665
        %v1676 = vrcp.pop %v1668
        %v1677 = vmul.f32 %v1630, %v1669
        %v1678 = vmul.f32 %v1632, %v1670
        %v1679 = vmul.f32 %v1634, %v1671
        %v1680 = vmul.f32 %v1636, %v1672
        %v1681 = vmul.f32 %v1638, %v1673
        %v1682 = vmul.f32 %v1640, %v1674
        %v1683 = vmul.f32 %v1642, %v1675
        %v1684 = vmul.f32 %v1644, %v1676
        %v1689 = vrot.slane %v675, 1
        %v1690 = vrot.slane %v675, 2
        %v1691 = vrot.slane %v675, 3
        %v1692 = vrot.slane %v675, 4
        %v1693 = vrot.slane %v675, 5
        %v1694 = vrot.slane %v675, 6
        %v1695 = vrot.slane %v675, 7
        %v1696 = vrot.slane %v677, 1
        %v1697 = vrot.slane %v677, 2
        %v1698 = vrot.slane %v677, 3
        %v1699 = vrot.slane %v677, 4
        %v1700 = vrot.slane %v677, 5
        %v1701 = vrot.slane %v677, 6
        %v1702 = vrot.slane %v677, 7
        %v1703 = vrot.slane %v680, 1
        %v1704 = vrot.slane %v680, 2
        %v1705 = vrot.slane %v680, 3
        %v1706 = vrot.slane %v680, 4
        %v1707 = vrot.slane %v680, 5
        %v1708 = vrot.slane %v680, 6
        %v1709 = vrot.slane %v680, 7
        %v1710 = vrot.slane %v682, 1
        %v1711 = vrot.slane %v682, 2
        %v1712 = vrot.slane %v682, 3
        %v1713 = vrot.slane %v682, 4
        %v1714 = vrot.slane %v682, 5
        %v1715 = vrot.slane %v682, 6
        %v1716 = vrot.slane %v682, 7
        %v1717 = vperm.slane %v675, 0
        %v1718 = vperm.slane %v1689, 0
        %v1719 = vperm.slane %v1690, 0
        %v1720 = vperm.slane %v1691, 0
        %v1721 = vperm.slane %v1692, 0
        %v1722 = vperm.slane %v1693, 0
        %v1723 = vperm.slane %v1694, 0
        %v1724 = vperm.slane %v1695, 0
        %v1725 = vperm.slane %v677, 0
        %v1726 = vperm.slane %v1696, 0
        %v1727 = vperm.slane %v1697, 0
        %v1728 = vperm.slane %v1698, 0
        %v1729 = vperm.slane %v1699, 0
        %v1730 = vperm.slane %v1700, 0
        %v1731 = vperm.slane %v1701, 0
        %v1732 = vperm.slane %v1702, 0
        %v1733 = vperm.slane %v680, 0
        %v1734 = vperm.slane %v1703, 0
        %v1735 = vperm.slane %v1704, 0
        %v1736 = vperm.slane %v1705, 0
        %v1737 = vperm.slane %v1706, 0
        %v1738 = vperm.slane %v1707, 0
        %v1739 = vperm.slane %v1708, 0
        %v1740 = vperm.slane %v1709, 0
        %v1741 = vperm.slane %v682, 0
        %v1742 = vperm.slane %v1710, 0
        %v1743 = vperm.slane %v1711, 0
        %v1744 = vperm.slane %v1712, 0
        %v1745 = vperm.slane %v1713, 0
        %v1746 = vperm.slane %v1714, 0
        %v1747 = vperm.slane %v1715, 0
        %v1748 = vperm.slane %v1716, 0
        %v1781 = vmul.f32 %v1677, %v1717
        %v1782 = vmul.f32 %v1678, %v1717
        %v1783 = vmul.f32 %v1677, %v1718
        %v1784 = vmul.f32 %v1678, %v1718
        %v1785 = vmul.f32 %v1677, %v1719
        %v1786 = vmul.f32 %v1678, %v1719
        %v1787 = vmul.f32 %v1677, %v1720
        %v1788 = vmul.f32 %v1678, %v1720
        %v1789 = vmul.f32 %v1677, %v1721
        %v1790 = vmul.f32 %v1678, %v1721
        %v1791 = vmul.f32 %v1677, %v1722
        %v1792 = vmul.f32 %v1678, %v1722
        %v1793 = vmul.f32 %v1677, %v1723
        %v1794 = vmul.f32 %v1678, %v1723
        %v1795 = vmul.f32 %v1677, %v1724
        %v1796 = vmul.f32 %v1678, %v1724
        %v1797 = vmul.f32 %v1679, %v1725
        %v1798 = vmul.f32 %v1680, %v1725
        %v1799 = vmul.f32 %v1679, %v1726
        %v1800 = vmul.f32 %v1680, %v1726
        %v1801 = vmul.f32 %v1679, %v1727
        %v1802 = vmul.f32 %v1680, %v1727
        %v1803 = vmul.f32 %v1679, %v1728
        %v1804 = vmul.f32 %v1680, %v1728
        %v1805 = vmul.f32 %v1679, %v1729
        %v1806 = vmul.f32 %v1680, %v1729
        %v1807 = vmul.f32 %v1679, %v1730
        %v1808 = vmul.f32 %v1680, %v1730
        %v1809 = vmul.f32 %v1679, %v1731
        %v1810 = vmul.f32 %v1680, %v1731
        %v1811 = vmul.f32 %v1679, %v1732
        %v1812 = vmul.f32 %v1680, %v1732
        %v1813 = vmul.f32 %v1681, %v1733
        %v1814 = vmul.f32 %v1682, %v1733
        %v1815 = vmul.f32 %v1681, %v1734
        %v1816 = vmul.f32 %v1682, %v1734
        %v1817 = vmul.f32 %v1681, %v1735
        %v1818 = vmul.f32 %v1682, %v1735
        %v1819 = vmul.f32 %v1681, %v1736
        %v1820 = vmul.f32 %v1682, %v1736
        %v1821 = vmul.f32 %v1681, %v1737
        %v1822 = vmul.f32 %v1682, %v1737
        %v1823 = vmul.f32 %v1681, %v1738
        %v1824 = vmul.f32 %v1682, %v1738
        %v1825 = vmul.f32 %v1681, %v1739
        %v1826 = vmul.f32 %v1682, %v1739
        %v1827 = vmul.f32 %v1681, %v1740
        %v1828 = vmul.f32 %v1682, %v1740
        %v1829 = vmul.f32 %v1683, %v1741
        %v1830 = vmul.f32 %v1684, %v1741
        %v1831 = vmul.f32 %v1683, %v1742
        %v1832 = vmul.f32 %v1684, %v1742
        %v1833 = vmul.f32 %v1683, %v1743
        %v1834 = vmul.f32 %v1684, %v1743
        %v1835 = vmul.f32 %v1683, %v1744
        %v1836 = vmul.f32 %v1684, %v1744
        %v1837 = vmul.f32 %v1683, %v1745
        %v1838 = vmul.f32 %v1684, %v1745
        %v1839 = vmul.f32 %v1683, %v1746
        %v1840 = vmul.f32 %v1684, %v1746
        %v1841 = vmul.f32 %v1683, %v1747
        %v1842 = vmul.f32 %v1684, %v1747
        %v1843 = vmul.f32 %v1683, %v1748
        %v1844 = vmul.f32 %v1684, %v1748
        %v1845 = vsel %vm1260, %v1781, 0.0
        %1846 = vadd.xlane.f32.xlu0 %v1845
        %v1847 = vpop.xlane.xlu0 %1846
        %v1848 = vsel %vm1260, %v1782, 0.0
        %1849 = vadd.xlane.f32.xlu0 %v1848
        %v1850 = vpop.xlane.xlu0 %1849
        %v1851 = vsel %vm1260, %v1783, 0.0
        %1852 = vadd.xlane.f32.xlu0 %v1851
        %v1853 = vpop.xlane.xlu0 %1852
        %v1854 = vsel %vm1260, %v1784, 0.0
        %1855 = vadd.xlane.f32.xlu0 %v1854
        %v1856 = vpop.xlane.xlu0 %1855
        %v1857 = vsel %vm1260, %v1785, 0.0
        %1858 = vadd.xlane.f32.xlu0 %v1857
        %v1859 = vpop.xlane.xlu0 %1858
        %v1860 = vsel %vm1260, %v1786, 0.0
        %1861 = vadd.xlane.f32.xlu0 %v1860
        %v1862 = vpop.xlane.xlu0 %1861
        %v1863 = vsel %vm1260, %v1787, 0.0
        %1864 = vadd.xlane.f32.xlu0 %v1863
        %v1865 = vpop.xlane.xlu0 %1864
        %v1866 = vsel %vm1260, %v1788, 0.0
        %1867 = vadd.xlane.f32.xlu0 %v1866
        %v1868 = vpop.xlane.xlu0 %1867
        %v1869 = vsel %vm1260, %v1789, 0.0
        %1870 = vadd.xlane.f32.xlu0 %v1869
        %v1871 = vpop.xlane.xlu0 %1870
        %v1872 = vsel %vm1260, %v1790, 0.0
        %1873 = vadd.xlane.f32.xlu0 %v1872
        %v1874 = vpop.xlane.xlu0 %1873
        %v1875 = vsel %vm1260, %v1791, 0.0
        %1876 = vadd.xlane.f32.xlu0 %v1875
        %v1877 = vpop.xlane.xlu0 %1876
        %v1878 = vsel %vm1260, %v1792, 0.0
        %1879 = vadd.xlane.f32.xlu0 %v1878
        %v1880 = vpop.xlane.xlu0 %1879
        %v1881 = vsel %vm1260, %v1793, 0.0
        %1882 = vadd.xlane.f32.xlu0 %v1881
        %v1883 = vpop.xlane.xlu0 %1882
        %v1884 = vsel %vm1260, %v1794, 0.0
        %1885 = vadd.xlane.f32.xlu0 %v1884
        %v1886 = vpop.xlane.xlu0 %1885
        %v1887 = vsel %vm1260, %v1795, 0.0
        %1888 = vadd.xlane.f32.xlu0 %v1887
        %v1889 = vpop.xlane.xlu0 %1888
        %v1890 = vsel %vm1260, %v1796, 0.0
        %1891 = vadd.xlane.f32.xlu0 %v1890
        %v1892 = vpop.xlane.xlu0 %1891
        %v1893 = vsel %vm1260, %v1797, 0.0
        %1894 = vadd.xlane.f32.xlu0 %v1893
        %v1895 = vpop.xlane.xlu0 %1894
        %v1896 = vsel %vm1260, %v1798, 0.0
        %1897 = vadd.xlane.f32.xlu0 %v1896
        %v1898 = vpop.xlane.xlu0 %1897
        %v1899 = vsel %vm1260, %v1799, 0.0
        %1900 = vadd.xlane.f32.xlu0 %v1899
        %v1901 = vpop.xlane.xlu0 %1900
        %v1902 = vsel %vm1260, %v1800, 0.0
        %1903 = vadd.xlane.f32.xlu0 %v1902
        %v1904 = vpop.xlane.xlu0 %1903
        %v1905 = vsel %vm1260, %v1801, 0.0
        %1906 = vadd.xlane.f32.xlu0 %v1905
        %v1907 = vpop.xlane.xlu0 %1906
        %v1908 = vsel %vm1260, %v1802, 0.0
        %1909 = vadd.xlane.f32.xlu0 %v1908
        %v1910 = vpop.xlane.xlu0 %1909
        %v1911 = vsel %vm1260, %v1803, 0.0
        %1912 = vadd.xlane.f32.xlu0 %v1911
        %v1913 = vpop.xlane.xlu0 %1912
        %v1914 = vsel %vm1260, %v1804, 0.0
        %1915 = vadd.xlane.f32.xlu0 %v1914
        %v1916 = vpop.xlane.xlu0 %1915
        %v1917 = vsel %vm1260, %v1805, 0.0
        %1918 = vadd.xlane.f32.xlu0 %v1917
        %v1919 = vpop.xlane.xlu0 %1918
        %v1920 = vsel %vm1260, %v1806, 0.0
        %1921 = vadd.xlane.f32.xlu0 %v1920
        %v1922 = vpop.xlane.xlu0 %1921
        %v1923 = vsel %vm1260, %v1807, 0.0
        %1924 = vadd.xlane.f32.xlu0 %v1923
        %v1925 = vpop.xlane.xlu0 %1924
        %v1926 = vsel %vm1260, %v1808, 0.0
        %1927 = vadd.xlane.f32.xlu0 %v1926
        %v1928 = vpop.xlane.xlu0 %1927
        %v1929 = vsel %vm1260, %v1809, 0.0
        %1930 = vadd.xlane.f32.xlu0 %v1929
        %v1931 = vpop.xlane.xlu0 %1930
        %v1932 = vsel %vm1260, %v1810, 0.0
        %1933 = vadd.xlane.f32.xlu0 %v1932
        %v1934 = vpop.xlane.xlu0 %1933
        %v1935 = vsel %vm1260, %v1811, 0.0
        %1936 = vadd.xlane.f32.xlu0 %v1935
        %v1937 = vpop.xlane.xlu0 %1936
        %v1938 = vsel %vm1260, %v1812, 0.0
        %1939 = vadd.xlane.f32.xlu0 %v1938
        %v1940 = vpop.xlane.xlu0 %1939
        %v1941 = vsel %vm1260, %v1813, 0.0
        %1942 = vadd.xlane.f32.xlu0 %v1941
        %v1943 = vpop.xlane.xlu0 %1942
        %v1944 = vsel %vm1260, %v1814, 0.0
        %1945 = vadd.xlane.f32.xlu0 %v1944
        %v1946 = vpop.xlane.xlu0 %1945
        %v1947 = vsel %vm1260, %v1815, 0.0
        %1948 = vadd.xlane.f32.xlu0 %v1947
        %v1949 = vpop.xlane.xlu0 %1948
        %v1950 = vsel %vm1260, %v1816, 0.0
        %1951 = vadd.xlane.f32.xlu0 %v1950
        %v1952 = vpop.xlane.xlu0 %1951
        %v1953 = vsel %vm1260, %v1817, 0.0
        %1954 = vadd.xlane.f32.xlu0 %v1953
        %v1955 = vpop.xlane.xlu0 %1954
        %v1956 = vsel %vm1260, %v1818, 0.0
        %1957 = vadd.xlane.f32.xlu0 %v1956
        %v1958 = vpop.xlane.xlu0 %1957
        %v1959 = vsel %vm1260, %v1819, 0.0
        %1960 = vadd.xlane.f32.xlu0 %v1959
        %v1961 = vpop.xlane.xlu0 %1960
        %v1962 = vsel %vm1260, %v1820, 0.0
        %1963 = vadd.xlane.f32.xlu0 %v1962
        %v1964 = vpop.xlane.xlu0 %1963
        %v1965 = vsel %vm1260, %v1821, 0.0
        %1966 = vadd.xlane.f32.xlu0 %v1965
        %v1967 = vpop.xlane.xlu0 %1966
        %v1968 = vsel %vm1260, %v1822, 0.0
        %1969 = vadd.xlane.f32.xlu0 %v1968
        %v1970 = vpop.xlane.xlu0 %1969
        %v1971 = vsel %vm1260, %v1823, 0.0
        %1972 = vadd.xlane.f32.xlu0 %v1971
        %v1973 = vpop.xlane.xlu0 %1972
        %v1974 = vsel %vm1260, %v1824, 0.0
        %1975 = vadd.xlane.f32.xlu0 %v1974
        %v1976 = vpop.xlane.xlu0 %1975
        %v1977 = vsel %vm1260, %v1825, 0.0
        %1978 = vadd.xlane.f32.xlu0 %v1977
        %v1979 = vpop.xlane.xlu0 %1978
        %v1980 = vsel %vm1260, %v1826, 0.0
        %1981 = vadd.xlane.f32.xlu0 %v1980
        %v1982 = vpop.xlane.xlu0 %1981
        %v1983 = vsel %vm1260, %v1827, 0.0
        %1984 = vadd.xlane.f32.xlu0 %v1983
        %v1985 = vpop.xlane.xlu0 %1984
        %v1986 = vsel %vm1260, %v1828, 0.0
        %1987 = vadd.xlane.f32.xlu0 %v1986
        %v1988 = vpop.xlane.xlu0 %1987
        %v1989 = vsel %vm1260, %v1829, 0.0
        %1990 = vadd.xlane.f32.xlu0 %v1989
        %v1991 = vpop.xlane.xlu0 %1990
        %v1992 = vsel %vm1260, %v1830, 0.0
        %1993 = vadd.xlane.f32.xlu0 %v1992
        %v1994 = vpop.xlane.xlu0 %1993
        %v1995 = vsel %vm1260, %v1831, 0.0
        %1996 = vadd.xlane.f32.xlu0 %v1995
        %v1997 = vpop.xlane.xlu0 %1996
        %v1998 = vsel %vm1260, %v1832, 0.0
        %1999 = vadd.xlane.f32.xlu0 %v1998
        %v2000 = vpop.xlane.xlu0 %1999
        %v2001 = vsel %vm1260, %v1833, 0.0
        %2002 = vadd.xlane.f32.xlu0 %v2001
        %v2003 = vpop.xlane.xlu0 %2002
        %v2004 = vsel %vm1260, %v1834, 0.0
        %2005 = vadd.xlane.f32.xlu0 %v2004
        %v2006 = vpop.xlane.xlu0 %2005
        %v2007 = vsel %vm1260, %v1835, 0.0
        %2008 = vadd.xlane.f32.xlu0 %v2007
        %v2009 = vpop.xlane.xlu0 %2008
        %v2010 = vsel %vm1260, %v1836, 0.0
        %2011 = vadd.xlane.f32.xlu0 %v2010
        %v2012 = vpop.xlane.xlu0 %2011
        %v2013 = vsel %vm1260, %v1837, 0.0
        %2014 = vadd.xlane.f32.xlu0 %v2013
        %v2015 = vpop.xlane.xlu0 %2014
        %v2016 = vsel %vm1260, %v1838, 0.0
        %2017 = vadd.xlane.f32.xlu0 %v2016
        %v2018 = vpop.xlane.xlu0 %2017
        %v2019 = vsel %vm1260, %v1839, 0.0
        %2020 = vadd.xlane.f32.xlu0 %v2019
        %v2021 = vpop.xlane.xlu0 %2020
        %v2022 = vsel %vm1260, %v1840, 0.0
        %2023 = vadd.xlane.f32.xlu0 %v2022
        %v2024 = vpop.xlane.xlu0 %2023
        %v2025 = vsel %vm1260, %v1841, 0.0
        %2026 = vadd.xlane.f32.xlu0 %v2025
        %v2027 = vpop.xlane.xlu0 %2026
        %v2028 = vsel %vm1260, %v1842, 0.0
        %2029 = vadd.xlane.f32.xlu0 %v2028
        %v2030 = vpop.xlane.xlu0 %2029
        %v2031 = vsel %vm1260, %v1843, 0.0
        %2032 = vadd.xlane.f32.xlu0 %v2031
        %v2033 = vpop.xlane.xlu0 %2032
        %v2034 = vsel %vm1260, %v1844, 0.0
        %2035 = vadd.xlane.f32.xlu0 %v2034
        %v2036 = vpop.xlane.xlu0 %2035
        %v2101 = vlaneseq
        %v2102 = vand.u32 %v2101, 127
        %v2103 = vperm.slane %v1847, %v2102
        %v2104 = vadd.s32 %v2102, 4294967288
        %v2105 = vperm.slane %v1850, %v2104
        %vm2106 = vcmask 130112
        %v2107 = vsel %vm2106, %v2105, %v2103
        %v2108 = vperm.slane %v1853, %v2102
        %v2109 = vperm.slane %v1856, %v2104
        %v2110 = vsel %vm2106, %v2109, %v2108
        %v2111 = vperm.slane %v1859, %v2102
        %v2112 = vperm.slane %v1862, %v2104
        %v2113 = vsel %vm2106, %v2112, %v2111
        %v2114 = vperm.slane %v1865, %v2102
        %v2115 = vperm.slane %v1868, %v2104
        %v2116 = vsel %vm2106, %v2115, %v2114
        %v2117 = vperm.slane %v1871, %v2102
        %v2118 = vperm.slane %v1874, %v2104
        %v2119 = vsel %vm2106, %v2118, %v2117
        %v2120 = vperm.slane %v1877, %v2102
        %v2121 = vperm.slane %v1880, %v2104
        %v2122 = vsel %vm2106, %v2121, %v2120
        %v2123 = vperm.slane %v1883, %v2102
        %v2124 = vperm.slane %v1886, %v2104
        %v2125 = vsel %vm2106, %v2124, %v2123
        %v2126 = vperm.slane %v1889, %v2102
        %v2127 = vperm.slane %v1892, %v2104
        %v2128 = vsel %vm2106, %v2127, %v2126
        %v2129 = vperm.slane %v1895, %v2102
        %v2130 = vperm.slane %v1898, %v2104
        %v2131 = vsel %vm2106, %v2130, %v2129
        %v2132 = vperm.slane %v1901, %v2102
        %v2133 = vperm.slane %v1904, %v2104
        %v2134 = vsel %vm2106, %v2133, %v2132
        %v2135 = vperm.slane %v1907, %v2102
        %v2136 = vperm.slane %v1910, %v2104
        %v2137 = vsel %vm2106, %v2136, %v2135
        %v2138 = vperm.slane %v1913, %v2102
        %v2139 = vperm.slane %v1916, %v2104
        %v2140 = vsel %vm2106, %v2139, %v2138
        %v2141 = vperm.slane %v1919, %v2102
        %v2142 = vperm.slane %v1922, %v2104
        %v2143 = vsel %vm2106, %v2142, %v2141
        %v2144 = vperm.slane %v1925, %v2102
        %v2145 = vperm.slane %v1928, %v2104
        %v2146 = vsel %vm2106, %v2145, %v2144
        %v2147 = vperm.slane %v1931, %v2102
        %v2148 = vperm.slane %v1934, %v2104
        %v2149 = vsel %vm2106, %v2148, %v2147
        %v2150 = vperm.slane %v1937, %v2102
        %v2151 = vperm.slane %v1940, %v2104
        %v2152 = vsel %vm2106, %v2151, %v2150
        %v2153 = vperm.slane %v1943, %v2102
        %v2154 = vperm.slane %v1946, %v2104
        %v2155 = vsel %vm2106, %v2154, %v2153
        %v2156 = vperm.slane %v1949, %v2102
        %v2157 = vperm.slane %v1952, %v2104
        %v2158 = vsel %vm2106, %v2157, %v2156
        %v2159 = vperm.slane %v1955, %v2102
        %v2160 = vperm.slane %v1958, %v2104
        %v2161 = vsel %vm2106, %v2160, %v2159
        %v2162 = vperm.slane %v1961, %v2102
        %v2163 = vperm.slane %v1964, %v2104
        %v2164 = vsel %vm2106, %v2163, %v2162
        %v2165 = vperm.slane %v1967, %v2102
        %v2166 = vperm.slane %v1970, %v2104
        %v2167 = vsel %vm2106, %v2166, %v2165
        %v2168 = vperm.slane %v1973, %v2102
        %v2169 = vperm.slane %v1976, %v2104
        %v2170 = vsel %vm2106, %v2169, %v2168
        %v2171 = vperm.slane %v1979, %v2102
        %v2172 = vperm.slane %v1982, %v2104
        %v2173 = vsel %vm2106, %v2172, %v2171
        %v2174 = vperm.slane %v1985, %v2102
        %v2175 = vperm.slane %v1988, %v2104
        %v2176 = vsel %vm2106, %v2175, %v2174
        %v2177 = vperm.slane %v1991, %v2102
        %v2178 = vperm.slane %v1994, %v2104
        %v2179 = vsel %vm2106, %v2178, %v2177
        %v2180 = vperm.slane %v1997, %v2102
        %v2181 = vperm.slane %v2000, %v2104
        %v2182 = vsel %vm2106, %v2181, %v2180
        %v2183 = vperm.slane %v2003, %v2102
        %v2184 = vperm.slane %v2006, %v2104
        %v2185 = vsel %vm2106, %v2184, %v2183
        %v2186 = vperm.slane %v2009, %v2102
        %v2187 = vperm.slane %v2012, %v2104
        %v2188 = vsel %vm2106, %v2187, %v2186
        %v2189 = vperm.slane %v2015, %v2102
        %v2190 = vperm.slane %v2018, %v2104
        %v2191 = vsel %vm2106, %v2190, %v2189
        %v2192 = vperm.slane %v2021, %v2102
        %v2193 = vperm.slane %v2024, %v2104
        %v2194 = vsel %vm2106, %v2193, %v2192
        %v2195 = vperm.slane %v2027, %v2102
        %v2196 = vperm.slane %v2030, %v2104
        %v2197 = vsel %vm2106, %v2196, %v2195
        %v2198 = vperm.slane %v2033, %v2102
        %v2199 = vperm.slane %v2036, %v2104
        %v2200 = vsel %vm2106, %v2199, %v2198
        %vm2201 = vcmask 1041409
        %v2202 = vsel %vm2201, %v2110, %v2107
        %vm2203 = vcmask 1042434
        %v2204 = vsel %vm2203, %v2113, %v2202
        %vm2205 = vcmask 1043459
        %v2206 = vsel %vm2205, %v2116, %v2204
        %vm2207 = vcmask 1044484
        %v2208 = vsel %vm2207, %v2119, %v2206
        %vm2209 = vcmask 1045509
        %v2210 = vsel %vm2209, %v2122, %v2208
        %vm2211 = vcmask 1046534
        %v2212 = vsel %vm2211, %v2125, %v2210
        %vm2213 = vcmask 1047559
        %v2214 = vsel %vm2213, %v2128, %v2212
        %v2215 = vsel %vm2201, %v2134, %v2131
        %v2216 = vsel %vm2203, %v2137, %v2215
        %v2217 = vsel %vm2205, %v2140, %v2216
        %v2218 = vsel %vm2207, %v2143, %v2217
        %v2219 = vsel %vm2209, %v2146, %v2218
        %v2220 = vsel %vm2211, %v2149, %v2219
        %v2221 = vsel %vm2213, %v2152, %v2220
        %v2222 = vsel %vm2201, %v2158, %v2155
        %v2223 = vsel %vm2203, %v2161, %v2222
        %v2224 = vsel %vm2205, %v2164, %v2223
        %v2225 = vsel %vm2207, %v2167, %v2224
        %v2226 = vsel %vm2209, %v2170, %v2225
        %v2227 = vsel %vm2211, %v2173, %v2226
        %v2228 = vsel %vm2213, %v2176, %v2227
        %v2229 = vsel %vm2201, %v2182, %v2179
        %v2230 = vsel %vm2203, %v2185, %v2229
        %v2231 = vsel %vm2205, %v2188, %v2230
        %v2232 = vsel %vm2207, %v2191, %v2231
        %v2233 = vsel %vm2209, %v2194, %v2232
        %v2234 = vsel %vm2211, %v2197, %v2233
        %v2235 = vsel %vm2213, %v2200, %v2234
        %2240 = vxpose.xlu0.b32.start [1/16] %v2214, 128
        %2241 = vxpose.xlu0.b32.cont [2/16] %v2221, 128
        %2242 = vxpose.xlu0.b32.cont [3/16] %v2228, 128
        %2243 = vxpose.xlu0.b32.cont [4/16] %v2235, 128
        %2244 = vxpose.xlu0.b32.cont [5/16] 0.0, 128
        %2245 = vxpose.xlu0.b32.cont [6/16] 0.0, 128
        %2246 = vxpose.xlu0.b32.cont [7/16] 0.0, 128
        %2247 = vxpose.xlu0.b32.cont [8/16] 0.0, 128
        %2248 = vxpose.xlu0.b32.cont [9/16] 0.0, 128
        %2249 = vxpose.xlu0.b32.cont [10/16] 0.0, 128
        %2250 = vxpose.xlu0.b32.cont [11/16] 0.0, 128
        %2251 = vxpose.xlu0.b32.cont [12/16] 0.0, 128
        %2252 = vxpose.xlu0.b32.cont [13/16] 0.0, 128
        %2253 = vxpose.xlu0.b32.cont [14/16] 0.0, 128
        %2254 = vxpose.xlu0.b32.cont [15/16] 0.0, 128
        %2255 = vxpose.xlu0.b32.end [16/16] 0.0, 128
        %v2256 = vpop.trf.xlu0
        %v2257 = vpop.trf.xlu0
        %v2258 = vpop.trf.xlu0
        %v2259 = vpop.trf.xlu0
        %v2260 = vpop.trf.xlu0
        %v2261 = vpop.trf.xlu0
        %v2262 = vpop.trf.xlu0
        %v2263 = vpop.trf.xlu0
        %v2264 = vpop.trf.xlu0
        %v2265 = vpop.trf.xlu0
        %v2266 = vpop.trf.xlu0
        %v2267 = vpop.trf.xlu0
        %v2268 = vpop.trf.xlu0
        %v2269 = vpop.trf.xlu0
        %v2270 = vpop.trf.xlu0
        %v2271 = vpop.trf.xlu0
        %v2272 = vpack.c.bf16 %v2257, %v2256
        %v2273 = vld [vmem:[#allocation7] sm:$0xf]
        %v2274 = vld [vmem:[#allocation7 + $0x4] sm:$0xf]
        %v2275 = vld [vmem:[#allocation7 + $0x8] sm:$0xf]
        %v2276 = vld [vmem:[#allocation7 + $0xc] sm:$0xf]
        %v2281 = vunpack.c.l.b16 %v2273
        %v2282 = vunpack.c.l.b16 %v2274
        %v2283 = vunpack.c.l.b16 %v2275
        %v2284 = vunpack.c.l.b16 %v2276
        %v2285 = vpack.c.b16 %v2282, %v2281
        %v2286 = vpack.c.b16 %v2284, %v2283
        %v2290 = vsel %vm487, %v2272, 0
        %2292 = vmatpush.bf16.msra.mxu0 0
        %2293 = vmatpush.bf16.msra.mxu0 0
        %2294 = vmatpush.bf16.msra.mxu0 0
        %2295 = vmatpush.bf16.msra.mxu0 0
        %2296 = vmatpush.bf16.msra.mxu0 0
        %2297 = vmatpush.bf16.msra.mxu0 0
        %2298 = vmatpush.bf16.msra.mxu0 %v2286
        %2299 = vmatpush.bf16.msra.mxu0 %v2285
        %2300 = vmatmul.bf16.gmra.mxu0 %v2290
        %v2301 = vpop.f32.mrf.mxu0
        %v2302 = vadd.f32 0.0, %v2301
        %v2303 = vpop.f32.mrf.mxu0
        %v2304 = vadd.f32 0.0, %v2303
        %2305 = vdwg.mxu0
        %v2306 = vadd.f32 %v485, %v2302
        %v2307 = vadd.f32 %v486, %v2304
        %v2308 = vsel %vm487, %v2306, 0.0
        %2309 = vadd.xlane.f32.xlu0 %v2308
        %v2310 = vpop.xlane.xlu0 %2309
        %v2311 = vsel %vm487, %v2307, 0.0
        %2312 = vadd.xlane.f32.xlu0 %v2311
        %v2313 = vpop.xlane.xlu0 %2312
        %v2314 = vmul.f32 %v2310, %v500
        %v2315 = vmul.f32 %v2313, %v500
        %v2316 = vsub.f32 %v2306, %v2314
        %v2317 = vsub.f32 %v2307, %v2315
        %v2318 = vmul.f32 %v2316, %v2316
        %v2319 = vmul.f32 %v2317, %v2317
        %v2320 = vsel %vm487, %v2318, 0.0
        %2321 = vadd.xlane.f32.xlu0 %v2320
        %v2322 = vpop.xlane.xlu0 %2321
        %v2323 = vsel %vm487, %v2319, 0.0
        %2324 = vadd.xlane.f32.xlu0 %v2323
        %v2325 = vpop.xlane.xlu0 %2324
        %v2326 = vmul.f32 %v2322, %v500
        %v2327 = vmul.f32 %v2325, %v500
        %v2328 = vadd.f32 %v2326, 1e-05
        %v2329 = vadd.f32 %v2327, 1e-05
        %v2330 = vrsqrt.pop %v2328
        %v2331 = vmul.f32 %v2330, %v2328
        %v2332 = vmul.f32 %v2331, %v2330
        %v2333 = vmul.f32 0.5, %v2332
        %v2334 = vsub.f32 1.5, %v2333
        %v2335 = vmul.f32 %v2330, %v2334
        %vm2336 = vweird.f32 %v2328
        %vm2337 = vweird.f32 %v2330
        %vm2338 = vmor %vm2336, %vm2337
        %v2339 = vsel %vm2338, %v2330, %v2335
        %v2340 = vrsqrt.pop %v2329
        %v2341 = vmul.f32 %v2340, %v2329
        %v2342 = vmul.f32 %v2341, %v2340
        %v2343 = vmul.f32 0.5, %v2342
        %v2344 = vsub.f32 1.5, %v2343
        %v2345 = vmul.f32 %v2340, %v2344
        %vm2346 = vweird.f32 %v2329
        %vm2347 = vweird.f32 %v2340
        %vm2348 = vmor %vm2346, %vm2347
        %v2349 = vsel %vm2348, %v2340, %v2345
        %v2350 = vmul.f32 %v2316, %v2339
        %v2351 = vmul.f32 %v2317, %v2349
        %v2352 = vld [vmem:[%s6] sm:$0x1]
        %v2354 = vperm.slane %v2352, 0
        %v2356 = vmul.f32 %v2350, %v2354
        %v2357 = vmul.f32 %v2351, %v2354
        %v2358 = vld [vmem:[%s7] sm:$0x1]
        %v2360 = vperm.slane %v2358, 0
        %v2362 = vadd.f32 %v2356, %v2360
        %v2363 = vadd.f32 %v2357, %v2360
        %v2364 = vpack.c.bf16 %v2363, %v2362
        %v2365 = vld [vmem:[#allocation8] sm:$0xf]
        %v2366 = vld [vmem:[#allocation8 + $0x4] sm:$0xf]
        %v2367 = vld [vmem:[#allocation8 + $0x8] sm:$0xf]
        %v2368 = vld [vmem:[#allocation8 + $0xc] sm:$0xf]
        %v2369 = vld [vmem:[%s9] sm:$0x1]
        %v2371 = vperm.slane %v2369, 0
        %v2377 = vunpack.c.l.b16 %v2365
        %v2378 = vunpack.c.l.b16 %v2366
        %v2379 = vunpack.c.l.b16 %v2367
        %v2380 = vunpack.c.l.b16 %v2368
        %v2381 = vpack.c.b16 %v2378, %v2377
        %v2382 = vpack.c.b16 %v2380, %v2379
        %v2386 = vsel %vm487, %v2364, 0
        %2388 = vmatpush.bf16.msra.mxu0 0
        %2389 = vmatpush.bf16.msra.mxu0 0
        %2390 = vmatpush.bf16.msra.mxu0 0
        %2391 = vmatpush.bf16.msra.mxu0 0
        %2392 = vmatpush.bf16.msra.mxu0 0
        %2393 = vmatpush.bf16.msra.mxu0 0
        %2394 = vmatpush.bf16.msra.mxu0 %v2382
        %2395 = vmatpush.bf16.msra.mxu0 %v2381
        %2396 = vmatmul.bf16.gmra.mxu0 %v2386
        %v2397 = vpop.f32.mrf.mxu0
        %v2398 = vadd.f32 %v2371, %v2397
        %v2399 = vpop.f32.mrf.mxu0
        %v2400 = vadd.f32 %v2371, %v2399
        %2401 = vdwg.mxu0
        %vm2402 = vcmp.ge.f32.partialorder %v2398, 0.0
        %vm2403 = vcmp.ge.f32.partialorder %v2400, 0.0
        %v2404 = vmul.f32 %v2398, 0.2
        %v2405 = vmul.f32 %v2400, 0.2
        %v2406 = vsel %vm2402, %v2398, %v2404
        %v2407 = vsel %vm2403, %v2400, %v2405
        %v2408 = vpack.c.bf16 %v2407, %v2406
        %v2409 = vld [vmem:[%s10] sm:$0xf]
        %v2410 = vld [vmem:[%s10 + $0x4] sm:$0xf]
        %v2411 = vld [vmem:[%s10 + $0x8] sm:$0xf]
        %v2412 = vld [vmem:[%s10 + $0xc] sm:$0xf]
        %v2413 = vld [vmem:[%s10 + $0x10] sm:$0xf]
        %v2414 = vld [vmem:[%s10 + $0x14] sm:$0xf]
        %v2415 = vld [vmem:[%s10 + $0x18] sm:$0xf]
        %v2416 = vld [vmem:[%s10 + $0x1c] sm:$0xf]
        %v2417 = vld [vmem:[%s10 + $0x20] sm:$0xf]
        %v2418 = vld [vmem:[%s10 + $0x24] sm:$0xf]
        %v2419 = vld [vmem:[%s10 + $0x28] sm:$0xf]
        %v2420 = vld [vmem:[%s10 + $0x2c] sm:$0xf]
        %v2421 = vld [vmem:[%s10 + $0x30] sm:$0xf]
        %v2422 = vld [vmem:[%s10 + $0x34] sm:$0xf]
        %v2423 = vld [vmem:[%s10 + $0x38] sm:$0xf]
        %v2424 = vld [vmem:[%s10 + $0x3c] sm:$0xf]
        %v2425 = vld [vmem:[%s11] sm:$0x1]
        %v2427 = vperm.slane %v2425, 0
        %v2445 = vunpack.c.l.b16 %v2409
        %v2446 = vunpack.c.l.b16 %v2410
        %v2447 = vunpack.c.l.b16 %v2411
        %v2448 = vunpack.c.l.b16 %v2412
        %v2449 = vunpack.c.l.b16 %v2413
        %v2450 = vunpack.c.l.b16 %v2414
        %v2451 = vunpack.c.l.b16 %v2415
        %v2452 = vunpack.c.l.b16 %v2416
        %v2453 = vunpack.c.l.b16 %v2417
        %v2454 = vunpack.c.l.b16 %v2418
        %v2455 = vunpack.c.l.b16 %v2419
        %v2456 = vunpack.c.l.b16 %v2420
        %v2457 = vunpack.c.l.b16 %v2421
        %v2458 = vunpack.c.l.b16 %v2422
        %v2459 = vunpack.c.l.b16 %v2423
        %v2460 = vunpack.c.l.b16 %v2424
        %v2461 = vpack.c.b16 %v2446, %v2445
        %v2462 = vpack.c.b16 %v2448, %v2447
        %v2463 = vpack.c.b16 %v2450, %v2449
        %v2464 = vpack.c.b16 %v2452, %v2451
        %v2465 = vpack.c.b16 %v2454, %v2453
        %v2466 = vpack.c.b16 %v2456, %v2455
        %v2467 = vpack.c.b16 %v2458, %v2457
        %v2468 = vpack.c.b16 %v2460, %v2459
        %2477 = vmatpush.bf16.msra.mxu0 %v2468
        %2478 = vmatpush.bf16.msra.mxu0 %v2467
        %2479 = vmatpush.bf16.msra.mxu0 %v2466
        %2480 = vmatpush.bf16.msra.mxu0 %v2465
        %2481 = vmatpush.bf16.msra.mxu0 %v2464
        %2482 = vmatpush.bf16.msra.mxu0 %v2463
        %2483 = vmatpush.bf16.msra.mxu0 %v2462
        %2484 = vmatpush.bf16.msra.mxu0 %v2461
        %2485 = vmatmul.bf16.gmra.mxu0 %v2408
        %v2486 = vpop.f32.mrf.mxu0
        %v2487 = vadd.f32 %v2427, %v2486
        %v2488 = vpop.f32.mrf.mxu0
        %v2489 = vadd.f32 %v2427, %v2488
        %2490 = vdwg.mxu0
        %v2491 = vadd.f32 %v2306, %v2487
        %v2492 = vadd.f32 %v2307, %v2489
        %2493 = vst.msk [vmem:[%s481] sm:$0xff] %vm487, %v2491
        %2494 = vst.msk [vmem:[%s481 + $0x8] sm:$0xff] %vm487, %v2492
        %s2495 = sand.u32 %s296, 1
        %s2496 = scalar_lea.sflag [#allocation4], %s2495
        %s2497 = sand.u32 %s296, 1
        %s2498 = smul.addr %s2497, 16
        %s2499 = scalar_lea.vmem [#allocation10], %s2498
        // Predicated region
        $region85: #{tpu_custom_call.1} parent=67 // pred_check
          %p2500 = pneg %p306
        $region86: #{tpu_custom_call.1} parent=67 // pred_check_branch
          %2502 = sbr.rel (%p2500) target = $region88
        $region87: #{tpu_custom_call.1} parent=67 // pred_region
          %s2503 = smul.u32 2, %s31
          %2505 = vsyncadd %s2496, 0
          %s2506 = smul.addr %s2503, 8
          %s2507 = scalar_lea.hbm %s12, %s2506
          %s2508 = sshll.u32 %s2499, 4
          %s2509 = int_to_ptr.vmem [resolvable:$true] %s2508
          %s2510 = sshll.u32 %s2507, 4
          %s2511 = int_to_ptr.hbm [resolvable:$true] %s2510
          %2516 = dma.vmem_to_hbm [thread:$0]  %s2509, 256, %s2511, %s2496, 128, 128, 8
        $region88: #{tpu_custom_call.1} parent=67 // pred_fallthru
          _
      $region68: #{tpu_custom_call.1} parent=5 // pred_fallthru
        _
      %p2517 = scmp.le.s32.totalorder 2, %s26
      // Predicated region
      $region89: #{tpu_custom_call.1} parent=5 // pred_check
        %p2518 = pneg %p2517
      $region90: #{tpu_custom_call.1} parent=5 // pred_check_branch
        %2520 = sbr.rel (%p2518) target = $region92
      $region91: #{tpu_custom_call.1} parent=5 // pred_region
        %s2521 = ssub.s32 %s26, 2
        // Predicated region
        $region93: #{tpu_custom_call.1} parent=91 // pred_check
          %p2522 = pneg %p312
        $region94: #{tpu_custom_call.1} parent=91 // pred_check_branch
          %2524 = sbr.rel (%p2522) target = $region96
        $region95: #{tpu_custom_call.1} parent=91 // pred_region
          %s2525 = sand.u32 %s297, 1
          %s2526 = scalar_lea.sflag [#allocation4], %s2525
          %s2527 = sand.u32 %s297, 1
          %s2528 = smul.addr %s2527, 16
          %s2529 = scalar_lea.vmem [#allocation10], %s2528
          %2531 = dma.done %s2526, 256
        $region96: #{tpu_custom_call.1} parent=91 // pred_fallthru
          _
      $region92: #{tpu_custom_call.1} parent=5 // pred_fallthru
        _
    $region6: #{tpu_custom_call.1} parent=1 // loop_footer
      %s30 = sadd.s32 1, %s26
    $region7: #{tpu_custom_call.1} parent=1 // loop_footer_branch
      %25 = sbr.rel target = $region3
    $region8: #{tpu_custom_call.1} parent=1 // loop_exit
      _
    %2532 = vsyncpa [#allocation3], 1
    %s2533 = scalar_lea.sflag [#allocation3], 1
    %2534 = vsyncpa %s2533, 1
    %2535 = vsyncpa [#allocation6], 1
    %2536 = vsyncpa [#allocation9], 1
    %2537 = vsyncpa [#allocation4], 1
    %s2538 = scalar_lea.sflag [#allocation4], 1
    %2539 = vsyncpa %s2538, 1

</llo_original>
